<compile_context>
chip_gen: v7x
topology: tpu7x:2x2x1
jax: 0.10.0
libtpu: 0.0.40
codegen_flags: <defaults>
</compile_context>

<pallas_src>
import numpy as np
import jax
import jax.numpy as jnp
from jax import lax
from jax.experimental import pallas as pl
from jax.experimental.pallas import tpu as pltpu


# --------------------------------------------------------------------------- #
# Kernel: one grid step == one batch element's attention.
# --------------------------------------------------------------------------- #
def _self_attention_kernel(t_ref, b_ref, m_ref, p_ref,
                           wk_ref, bk_ref, wq_ref, bq_ref, wv_ref, bv_ref,
                           wo_ref, bo_ref, o_ref):
    """Fused 2x2-pool + k/q/v projections + attention + output projection.

    Per grid step (one batch element):
      t_ref, b_ref, m_ref : (C, H*W)  f32   one batch's feature maps (flattened)
      p_ref               : (H*W, N) bf16  2x2 average-pool matrix (constant)
      wk/wq/wv_ref        : (Cp, C)  bf16  1x1-conv weights, Cp = Ce padded to 8
      bk/bq/bv_ref        : (Cp, 1)  f32   biases (padded rows exactly zero)
      wo_ref              : (C, Cp)  f32   gamma * output-projection weight
      bo_ref              : (C, 1)   f32   gamma * output-projection bias
      o_ref               : (C, N)   f32   gamma-scaled attention map (pooled res.)
    """
    pool_mat = p_ref[...]                                      # (HW, N) bf16

    def pool(x_ref):
        # 2x2 mean pool as a tiny MXU matmul: (C, HW) @ (HW, N) -> (C, N), f32 acc.
        return jnp.dot(x_ref[...].astype(jnp.bfloat16), pool_mat,
                       preferred_element_type=jnp.float32)

    def proj(w_ref, bias_ref, xp):
        # 1x1 conv on the pooled map: (Cp, C) @ (C, N) -> (Cp, N), f32 acc + bias.
        return jnp.dot(w_ref[...], xp.astype(jnp.bfloat16),
                       preferred_element_type=jnp.float32) + bias_ref[...]

    f = proj(wk_ref, bk_ref, pool(t_ref))      # key(t)    (Cp, N)
    g = proj(wq_ref, bq_ref, pool(b_ref))      # query(b)  (Cp, N)
    h = proj(wv_ref, bv_ref, pool(m_ref))      # value(m)  (Cp, N)

    # s[n1, n2] = sum_e f[e, n1] * g[e, n2]  == torch.bmm(f^T, g) for this batch.
    # (padded rows of f/g are exactly zero -> no effect on s)
    s = lax.dot_general(f.astype(jnp.bfloat16), g.astype(jnp.bfloat16),
                        (((0,), (0,)), ((), ())),
                        preferred_element_type=jnp.float32)    # (N, N) f32

    # softmax over n1 (axis 0) == torch softmax(dim=1); all-f32, exact reciprocal
    # so each column of beta sums to 1.
    s_max = jnp.max(s, axis=0, keepdims=True)
    e = jnp.exp(s - s_max)
    beta = e * pl.reciprocal(jnp.sum(e, axis=0, keepdims=True), approx=False)

    # v[e, n2] = sum_n1 h[e, n1] * beta[n1, n2]; beta kept f32 (parity).
    v = jnp.dot(h, beta, preferred_element_type=jnp.float32)   # (Cp, N)

    # Output 1x1 conv back to C channels; gamma already folded into wo/bo.
    o = jnp.dot(wo_ref[...], v, preferred_element_type=jnp.float32) + bo_ref[...]
    o_ref[...] = o.astype(o_ref.dtype)


# --------------------------------------------------------------------------- #
# Wrapper
# --------------------------------------------------------------------------- #
def _pool_matrix(H, W, scale):
    """(H*W, Hs*Ws) matrix implementing the 2x2 average pool (built at trace time)."""
    Hs, Ws = H // scale, W // scale
    p = np.zeros((H * W, Hs * Ws), np.float32)
    inv = 1.0 / (scale * scale)
    for h in range(H):
        for w in range(W):
            p[h * W + w, (h // scale) * Ws + (w // scale)] = inv
    return p


@jax.jit
def self_attention_forward(t, b, m, packed):
    """t, b, m: (B, C, H, W) NCHW f32, matching the PyTorch module."""
    ori = t + b + m
    B, C, H, W = m.shape
    scale = 2
    # adaptive_avg_pool2d to (H//2, W//2) with divisible sizes == 2x2 mean pool.
    # TODO(synk): general adaptive_avg_pool2d for H or W not divisible by 2.
    assert H % scale == 0 and W % scale == 0, "odd H/W not supported"
    Hs, Ws = H // scale, W // scale
    N, HW = Hs * Ws, H * W
    Cp = packed["wk"].shape[0]

    # Constant pooling matrix (numpy at trace time -> embedded HLO constant).
    pool_mat = jnp.asarray(_pool_matrix(H, W, scale), dtype=jnp.bfloat16)

    # Only free (contiguous) reshapes around the kernel — no pools / transposes /
    # concats / casts in the wrapper.
    t2 = t.reshape(B * C, HW)
    b2 = b.reshape(B * C, HW)
    m2 = m.reshape(B * C, HW)

    data_spec = pl.BlockSpec((C, HW), lambda i: (i, 0))
    const_spec = lambda a: pl.BlockSpec(a.shape, lambda i: (0, 0))

    flops = 2 * B * (3 * C * HW * N          # pooling matmuls
                     + 3 * Cp * C * N        # k/q/v projections
                     + 2 * Cp * N * N        # scores + value mix
                     + C * Cp * N)           # output projection
    bytes_accessed = (4 * (3 * B * C * HW + B * C * N)      # data in / out (f32)
                      + 2 * HW * N                          # pool matrix (bf16)
                      + 2 * 3 * Cp * C                      # k/q/v weights (bf16)
                      + 4 * (3 * Cp + C * Cp + C))          # biases + wo/bo (f32)

    o = pl.pallas_call(
        _self_attention_kernel,
        out_shape=jax.ShapeDtypeStruct((B * C, N), jnp.float32),
        grid_spec=pltpu.PrefetchScalarGridSpec(
            num_scalar_prefetch=0,
            grid=(B,),                       # one independent attention per batch
            in_specs=[data_spec, data_spec, data_spec,
                      const_spec(pool_mat),
                      const_spec(packed["wk"]), const_spec(packed["bk"]),
                      const_spec(packed["wq"]), const_spec(packed["bq"]),
                      const_spec(packed["wv"]), const_spec(packed["bv"]),
                      const_spec(packed["wo_g"]), const_spec(packed["bo_g"])],
            out_specs=pl.BlockSpec((C, N), lambda i: (i, 0)),
        ),
        compiler_params=pltpu.CompilerParams(
            dimension_semantics=("parallel",),   # v7x: one batch per TensorCore
            vmem_limit_bytes=8 * 1024 * 1024),
        cost_estimate=pl.CostEstimate(flops=flops,
                                      transcendentals=B * N * N,
                                      bytes_accessed=bytes_accessed),
    )(t2, b2, m2, pool_mat,
      packed["wk"], packed["bk"], packed["wq"], packed["bq"],
      packed["wv"], packed["bv"], packed["wo_g"], packed["bo_g"])

    # (B*C, N) rows are (batch, channel)-major -> free reshape to (B, C, Hs, Ws).
    o = o.reshape(B, C, Hs, Ws)
    # F.upsample(mode='bilinear'), align_corners=False == half-pixel bilinear resize.
    o_up = jax.image.resize(o, (B, C, H, W), method="bilinear")
    # gamma is already folded into wo_g / bo_g inside the kernel.
    return o_up + ori


# --------------------------------------------------------------------------- #
# Parameter handling
# --------------------------------------------------------------------------- #
def init_params(key, in_channels, k=8, gamma=0.0):
    # gamma defaults to 0.0 to match nn.Parameter(torch.tensor(0.0)).
    ce = in_channels // k
    ks = jax.random.split(key, 8)
    return {
        # Conv2d(in, ce, 1) weights -> (ce, in); biases kept 2-D (ce, 1).
        "wk": 0.1 * jax.random.normal(ks[0], (ce, in_channels), jnp.float32),
        "bk": 0.1 * jax.random.normal(ks[1], (ce, 1), jnp.float32),
        "wq": 0.1 * jax.random.normal(ks[2], (ce, in_channels), jnp.float32),
        "bq": 0.1 * jax.random.normal(ks[3], (ce, 1), jnp.float32),
        "wv": 0.1 * jax.random.normal(ks[4], (ce, in_channels), jnp.float32),
        "bv": 0.1 * jax.random.normal(ks[5], (ce, 1), jnp.float32),
        # Conv2d(ce, in, 1) -> (in, ce)
        "wo": 0.1 * jax.random.normal(ks[6], (in_channels, ce), jnp.float32),
        "bo": 0.1 * jax.random.normal(ks[7], (in_channels, 1), jnp.float32),
        "gamma": jnp.float32(gamma),
    }


def pack_params(params):
    """One-time packing: pad embedding dim to a multiple of 8 (zero rows/cols so the
    result is exact) and fold gamma into the output projection."""
    ce, _ = params["wk"].shape
    cp = max(8, -(-ce // 8) * 8)
    pad_r = cp - ce

    def pad_rows(x):
        return jnp.pad(x, ((0, pad_r),) + ((0, 0),) * (x.ndim - 1))

    gamma = params["gamma"]
    return {
        "wk": pad_rows(params["wk"]).astype(jnp.bfloat16),
        "bk": pad_rows(params["bk"]).astype(jnp.float32),
        "wq": pad_rows(params["wq"]).astype(jnp.bfloat16),
        "bq": pad_rows(params["bq"]).astype(jnp.float32),
        "wv": pad_rows(params["wv"]).astype(jnp.bfloat16),
        "bv": pad_rows(params["bv"]).astype(jnp.float32),
        "wo_g": jnp.pad(gamma * params["wo"], ((0, 0), (0, pad_r))).astype(jnp.float32),
        "bo_g": (gamma * params["bo"]).astype(jnp.float32),
    }


# --------------------------------------------------------------------------- #
# Pure-JAX f32 reference (mirrors the PyTorch module) for a sanity check.
# --------------------------------------------------------------------------- #
def reference_forward(t, b, m, params):
    ori = t + b + m
    B, C, H, W = m.shape
    Hs, Ws = H // 2, W // 2
    N = Hs * Ws

    def pool(x):
        return x.reshape(B, C, Hs, 2, Ws, 2).mean(axis=(3, 5))

    def conv1x1(x, w, bias):
        return jnp.einsum("oc,bchw->bohw", w, x) + bias.reshape(1, -1, 1, 1)

    f = conv1x1(pool(t), params["wk"], params["bk"]).reshape(B, -1, N)
    g = conv1x1(pool(b), params["wq"], params["bq"]).reshape(B, -1, N)
    h = conv1x1(pool(m), params["wv"], params["bv"]).reshape(B, -1, N)
    s = jnp.einsum("bcn,bcm->bnm", f, g)          # bmm(f^T, g)
    beta = jax.nn.softmax(s, axis=1)              # softmax over n1
    v = jnp.einsum("bcn,bnm->bcm", h, beta).reshape(B, -1, Hs, Ws)
    o = conv1x1(v, params["wo"], params["bo"])
    o_up = jax.image.resize(o, (B, C, H, W), method="bilinear")
    return params["gamma"] * o_up + ori


if __name__ == "__main__":
    B, C, H, W = 2, 32, 16, 16   # inChannels=32, k=8 -> embedding_channels=4
    key = jax.random.PRNGKey(0)
    k_t, k_b, k_m, k_p = jax.random.split(key, 4)
    t = jax.random.normal(k_t, (B, C, H, W), jnp.float32)
    b = jax.random.normal(k_b, (B, C, H, W), jnp.float32)
    m = jax.random.normal(k_m, (B, C, H, W), jnp.float32)
    # gamma=0.5 (instead of the module's 0.0 init) so the attention branch actually
    # contributes and the kernel path is exercised end-to-end.
    params = init_params(k_p, C, k=8, gamma=0.5)
    packed = pack_params(params)

    y = self_attention_forward(t, b, m, packed)
    jax.block_until_ready(y)
    assert y.shape == (B, C, H, W)

    y_ref = reference_forward(t, b, m, params)
    err = float(jnp.max(jnp.abs(y - y_ref)))
    assert err < 5e-2, f"mismatch vs f32 reference: {err}"
    print("KERNEL_OK")
</pallas_src>

<mosaic_0001>
module attributes {stable_mosaic.version = 11 : i64} {
  func.func @_self_attention_kernel(%arg0: i32, %arg1: memref<32x256xf32, #tpu.memory_space<vmem>>, %arg2: memref<32x256xf32, #tpu.memory_space<vmem>>, %arg3: memref<32x256xf32, #tpu.memory_space<vmem>>, %arg4: memref<256x64xbf16, #tpu.memory_space<vmem>>, %arg5: memref<8x32xbf16, #tpu.memory_space<vmem>>, %arg6: memref<8x1xf32, #tpu.memory_space<vmem>>, %arg7: memref<8x32xbf16, #tpu.memory_space<vmem>>, %arg8: memref<8x1xf32, #tpu.memory_space<vmem>>, %arg9: memref<8x32xbf16, #tpu.memory_space<vmem>>, %arg10: memref<8x1xf32, #tpu.memory_space<vmem>>, %arg11: memref<32x8xf32, #tpu.memory_space<vmem>>, %arg12: memref<32x1xf32, #tpu.memory_space<vmem>>, %arg13: memref<32x64xf32, #tpu.memory_space<vmem>>) attributes {dimension_semantics = [#tpu.dimension_semantics<parallel>], iteration_bounds = array<i64: 2>, scalar_prefetch = 0 : i64, scratch_operands = 0 : i64, tpu.core_type = #tpu.core_type<tc>, window_params = [{transform_indices = @transform_0, window_bounds = array<i64: 32, 256>}, {transform_indices = @transform_1, window_bounds = array<i64: 32, 256>}, {transform_indices = @transform_2, window_bounds = array<i64: 32, 256>}, {pipeline_mode = #tpu.pipeline_mode<synchronous>, transform_indices = @transform_3, window_bounds = array<i64: 256, 64>}, {pipeline_mode = #tpu.pipeline_mode<synchronous>, transform_indices = @transform_4, window_bounds = array<i64: 8, 32>}, {pipeline_mode = #tpu.pipeline_mode<synchronous>, transform_indices = @transform_5, window_bounds = array<i64: 8, 1>}, {pipeline_mode = #tpu.pipeline_mode<synchronous>, transform_indices = @transform_6, window_bounds = array<i64: 8, 32>}, {pipeline_mode = #tpu.pipeline_mode<synchronous>, transform_indices = @transform_7, window_bounds = array<i64: 8, 1>}, {pipeline_mode = #tpu.pipeline_mode<synchronous>, transform_indices = @transform_8, window_bounds = array<i64: 8, 32>}, {pipeline_mode = #tpu.pipeline_mode<synchronous>, transform_indices = @transform_9, window_bounds = array<i64: 8, 1>}, {pipeline_mode = #tpu.pipeline_mode<synchronous>, transform_indices = @transform_10, window_bounds = array<i64: 32, 8>}, {pipeline_mode = #tpu.pipeline_mode<synchronous>, transform_indices = @transform_11, window_bounds = array<i64: 32, 1>}, {transform_indices = @transform_12, window_bounds = array<i64: 32, 64>}]} {
    %c0 = arith.constant 0 : index
    %c0_0 = arith.constant 0 : index
    %0 = vector.load %arg4[%c0, %c0_0] : memref<256x64xbf16, #tpu.memory_space<vmem>>, vector<256x64xbf16>
    %c0_1 = arith.constant 0 : index
    %c0_2 = arith.constant 0 : index
    %1 = vector.load %arg1[%c0_1, %c0_2] : memref<32x256xf32, #tpu.memory_space<vmem>>, vector<32x256xf32>
    %2 = arith.truncf %1 : vector<32x256xf32> to vector<32x256xbf16>
    %cst = arith.constant dense<0.000000e+00> : vector<32x64xf32>
    %3 = tpu.matmul %2, %0, %cst {dimension_numbers = #tpu.dot_dimension_numbers<[1], [0], [0], [1], [0, 0, 1, 1], [], []>} : vector<32x256xbf16>, vector<256x64xbf16>, vector<32x64xf32> -> vector<32x64xf32>
    %c0_3 = arith.constant 0 : index
    %c0_4 = arith.constant 0 : index
    %4 = vector.load %arg5[%c0_3, %c0_4] : memref<8x32xbf16, #tpu.memory_space<vmem>>, vector<8x32xbf16>
    %5 = arith.truncf %3 : vector<32x64xf32> to vector<32x64xbf16>
    %cst_5 = arith.constant dense<0.000000e+00> : vector<8x64xf32>
    %6 = tpu.matmul %4, %5, %cst_5 {dimension_numbers = #tpu.dot_dimension_numbers<[1], [0], [0], [1], [0, 0, 1, 1], [], []>} : vector<8x32xbf16>, vector<32x64xbf16>, vector<8x64xf32> -> vector<8x64xf32>
    %c0_6 = arith.constant 0 : index
    %c0_7 = arith.constant 0 : index
    %7 = vector.load %arg6[%c0_6, %c0_7] : memref<8x1xf32, #tpu.memory_space<vmem>>, vector<8x1xf32>
    %8 = vector.broadcast %7 : vector<8x1xf32> to vector<8x64xf32>
    %9 = arith.addf %6, %8 : vector<8x64xf32>
    %c0_8 = arith.constant 0 : index
    %c0_9 = arith.constant 0 : index
    %10 = vector.load %arg2[%c0_8, %c0_9] : memref<32x256xf32, #tpu.memory_space<vmem>>, vector<32x256xf32>
    %11 = arith.truncf %10 : vector<32x256xf32> to vector<32x256xbf16>
    %cst_10 = arith.constant dense<0.000000e+00> : vector<32x64xf32>
    %12 = tpu.matmul %11, %0, %cst_10 {dimension_numbers = #tpu.dot_dimension_numbers<[1], [0], [0], [1], [0, 0, 1, 1], [], []>} : vector<32x256xbf16>, vector<256x64xbf16>, vector<32x64xf32> -> vector<32x64xf32>
    %c0_11 = arith.constant 0 : index
    %c0_12 = arith.constant 0 : index
    %13 = vector.load %arg7[%c0_11, %c0_12] : memref<8x32xbf16, #tpu.memory_space<vmem>>, vector<8x32xbf16>
    %14 = arith.truncf %12 : vector<32x64xf32> to vector<32x64xbf16>
    %cst_13 = arith.constant dense<0.000000e+00> : vector<8x64xf32>
    %15 = tpu.matmul %13, %14, %cst_13 {dimension_numbers = #tpu.dot_dimension_numbers<[1], [0], [0], [1], [0, 0, 1, 1], [], []>} : vector<8x32xbf16>, vector<32x64xbf16>, vector<8x64xf32> -> vector<8x64xf32>
    %c0_14 = arith.constant 0 : index
    %c0_15 = arith.constant 0 : index
    %16 = vector.load %arg8[%c0_14, %c0_15] : memref<8x1xf32, #tpu.memory_space<vmem>>, vector<8x1xf32>
    %17 = vector.broadcast %16 : vector<8x1xf32> to vector<8x64xf32>
    %18 = arith.addf %15, %17 : vector<8x64xf32>
    %c0_16 = arith.constant 0 : index
    %c0_17 = arith.constant 0 : index
    %19 = vector.load %arg3[%c0_16, %c0_17] : memref<32x256xf32, #tpu.memory_space<vmem>>, vector<32x256xf32>
    %20 = arith.truncf %19 : vector<32x256xf32> to vector<32x256xbf16>
    %cst_18 = arith.constant dense<0.000000e+00> : vector<32x64xf32>
    %21 = tpu.matmul %20, %0, %cst_18 {dimension_numbers = #tpu.dot_dimension_numbers<[1], [0], [0], [1], [0, 0, 1, 1], [], []>} : vector<32x256xbf16>, vector<256x64xbf16>, vector<32x64xf32> -> vector<32x64xf32>
    %c0_19 = arith.constant 0 : index
    %c0_20 = arith.constant 0 : index
    %22 = vector.load %arg9[%c0_19, %c0_20] : memref<8x32xbf16, #tpu.memory_space<vmem>>, vector<8x32xbf16>
    %23 = arith.truncf %21 : vector<32x64xf32> to vector<32x64xbf16>
    %cst_21 = arith.constant dense<0.000000e+00> : vector<8x64xf32>
    %24 = tpu.matmul %22, %23, %cst_21 {dimension_numbers = #tpu.dot_dimension_numbers<[1], [0], [0], [1], [0, 0, 1, 1], [], []>} : vector<8x32xbf16>, vector<32x64xbf16>, vector<8x64xf32> -> vector<8x64xf32>
    %c0_22 = arith.constant 0 : index
    %c0_23 = arith.constant 0 : index
    %25 = vector.load %arg10[%c0_22, %c0_23] : memref<8x1xf32, #tpu.memory_space<vmem>>, vector<8x1xf32>
    %26 = vector.broadcast %25 : vector<8x1xf32> to vector<8x64xf32>
    %27 = arith.addf %24, %26 : vector<8x64xf32>
    %28 = arith.truncf %9 : vector<8x64xf32> to vector<8x64xbf16>
    %29 = arith.truncf %18 : vector<8x64xf32> to vector<8x64xbf16>
    %cst_24 = arith.constant dense<0.000000e+00> : vector<64x64xf32>
    %30 = tpu.matmul %28, %29, %cst_24 {dimension_numbers = #tpu.dot_dimension_numbers<[0], [0], [1], [1], [0, 1, 1, 1], [], []>} : vector<8x64xbf16>, vector<8x64xbf16>, vector<64x64xf32> -> vector<64x64xf32>
    %cst_25 = arith.constant dense<0xFF800000> : vector<64xf32>
    %31 = vector.multi_reduction <maximumf>, %30, %cst_25 [0] : vector<64x64xf32> to vector<64xf32>
    %32 = vector.shape_cast %31 : vector<64xf32> to vector<1x64xf32>
    %33 = vector.broadcast %32 : vector<1x64xf32> to vector<64x64xf32>
    %34 = arith.subf %30, %33 : vector<64x64xf32>
    %35 = math.exp %34 : vector<64x64xf32>
    %cst_26 = arith.constant dense<0.000000e+00> : vector<64xf32>
    %36 = vector.multi_reduction <add>, %35, %cst_26 [0] : vector<64x64xf32> to vector<64xf32>
    %37 = vector.shape_cast %36 : vector<64xf32> to vector<1x64xf32>
    %38 = tpu.reciprocal %37 : vector<1x64xf32> -> vector<1x64xf32>
    %39 = vector.broadcast %38 : vector<1x64xf32> to vector<64x64xf32>
    %40 = arith.mulf %35, %39 : vector<64x64xf32>
    %cst_27 = arith.constant dense<0.000000e+00> : vector<8x64xf32>
    %41 = tpu.matmul %27, %40, %cst_27 {dimension_numbers = #tpu.dot_dimension_numbers<[1], [0], [0], [1], [0, 0, 1, 1], [], []>} : vector<8x64xf32>, vector<64x64xf32>, vector<8x64xf32> -> vector<8x64xf32>
    %c0_28 = arith.constant 0 : index
    %c0_29 = arith.constant 0 : index
    %42 = vector.load %arg11[%c0_28, %c0_29] : memref<32x8xf32, #tpu.memory_space<vmem>>, vector<32x8xf32>
    %cst_30 = arith.constant dense<0.000000e+00> : vector<32x64xf32>
    %43 = tpu.matmul %42, %41, %cst_30 {dimension_numbers = #tpu.dot_dimension_numbers<[1], [0], [0], [1], [0, 0, 1, 1], [], []>} : vector<32x8xf32>, vector<8x64xf32>, vector<32x64xf32> -> vector<32x64xf32>
    %c0_31 = arith.constant 0 : index
    %c0_32 = arith.constant 0 : index
    %44 = vector.load %arg12[%c0_31, %c0_32] : memref<32x1xf32, #tpu.memory_space<vmem>>, vector<32x1xf32>
    %45 = vector.broadcast %44 : vector<32x1xf32> to vector<32x64xf32>
    %46 = arith.addf %43, %45 : vector<32x64xf32>
    %c0_33 = arith.constant 0 : index
    %c0_34 = arith.constant 0 : index
    %47 = vector.load %arg13[%c0_33, %c0_34] : memref<32x64xf32, #tpu.memory_space<vmem>>, vector<32x64xf32>
    tpu.vector_store %arg13[%c0_33, %c0_34], %46 {strides = array<i32>} : memref<32x64xf32, #tpu.memory_space<vmem>>, vector<32x64xf32>,
    return
  }
  func.func @transform_0(%arg0: i32) -> (i32, i32) {
    %c0_i32 = arith.constant 0 : i32
    %c0_i32_0 = arith.constant 0 : i32
    return %arg0, %c0_i32 : i32, i32
  }
  func.func @transform_1(%arg0: i32) -> (i32, i32) {
    %c0_i32 = arith.constant 0 : i32
    %c0_i32_0 = arith.constant 0 : i32
    return %arg0, %c0_i32 : i32, i32
  }
  func.func @transform_2(%arg0: i32) -> (i32, i32) {
    %c0_i32 = arith.constant 0 : i32
    %c0_i32_0 = arith.constant 0 : i32
    return %arg0, %c0_i32 : i32, i32
  }
  func.func @transform_3(%arg0: i32) -> (i32, i32) {
    %c0_i32 = arith.constant 0 : i32
    %c0_i32_0 = arith.constant 0 : i32
    %c0_i32_1 = arith.constant 0 : i32
    return %c0_i32, %c0_i32_0 : i32, i32
  }
  func.func @transform_4(%arg0: i32) -> (i32, i32) {
    %c0_i32 = arith.constant 0 : i32
    %c0_i32_0 = arith.constant 0 : i32
    %c0_i32_1 = arith.constant 0 : i32
    return %c0_i32, %c0_i32_0 : i32, i32
  }
  func.func @transform_5(%arg0: i32) -> (i32, i32) {
    %c0_i32 = arith.constant 0 : i32
    %c0_i32_0 = arith.constant 0 : i32
    %c0_i32_1 = arith.constant 0 : i32
    return %c0_i32, %c0_i32_0 : i32, i32
  }
  func.func @transform_6(%arg0: i32) -> (i32, i32) {
    %c0_i32 = arith.constant 0 : i32
    %c0_i32_0 = arith.constant 0 : i32
    %c0_i32_1 = arith.constant 0 : i32
    return %c0_i32, %c0_i32_0 : i32, i32
  }
  func.func @transform_7(%arg0: i32) -> (i32, i32) {
    %c0_i32 = arith.constant 0 : i32
    %c0_i32_0 = arith.constant 0 : i32
    %c0_i32_1 = arith.constant 0 : i32
    return %c0_i32, %c0_i32_0 : i32, i32
  }
  func.func @transform_8(%arg0: i32) -> (i32, i32) {
    %c0_i32 = arith.constant 0 : i32
    %c0_i32_0 = arith.constant 0 : i32
    %c0_i32_1 = arith.constant 0 : i32
    return %c0_i32, %c0_i32_0 : i32, i32
  }
  func.func @transform_9(%arg0: i32) -> (i32, i32) {
    %c0_i32 = arith.constant 0 : i32
    %c0_i32_0 = arith.constant 0 : i32
    %c0_i32_1 = arith.constant 0 : i32
    return %c0_i32, %c0_i32_0 : i32, i32
  }
  func.func @transform_10(%arg0: i32) -> (i32, i32) {
    %c0_i32 = arith.constant 0 : i32
    %c0_i32_0 = arith.constant 0 : i32
    %c0_i32_1 = arith.constant 0 : i32
    return %c0_i32, %c0_i32_0 : i32, i32
  }
  func.func @transform_11(%arg0: i32) -> (i32, i32) {
    %c0_i32 = arith.constant 0 : i32
    %c0_i32_0 = arith.constant 0 : i32
    %c0_i32_1 = arith.constant 0 : i32
    return %c0_i32, %c0_i32_0 : i32, i32
  }
  func.func @transform_12(%arg0: i32) -> (i32, i32) {
    %c0_i32 = arith.constant 0 : i32
    %c0_i32_0 = arith.constant 0 : i32
    return %arg0, %c0_i32 : i32, i32
  }
}

</mosaic_0001>

<llo_original>
// kernel: self_attention_forward.1
$region0: #{self_attention_forward.1}
  #allocation0 [shape = 'u32[]', space=smem, size = 0x4, offset = 0x4, fixed_abs, tag = 'smem constant byte address 0x4 - core index']
  #allocation1 [shape = 'u32[144,128]{1,0:T(1,128)}', space=vmem, size = 0x12000, scoped, tag = 'internal scratch']
  %s0 = inlined_call_operand.vmem [shape: f32[64,256], index: 0, kind: input, shape index: {}]
  %s1 = inlined_call_operand.vmem [shape: f32[64,256], index: 1, kind: input, shape index: {}]
  %s2 = inlined_call_operand.vmem [shape: f32[64,256], index: 2, kind: input, shape index: {}]
  %s3 = inlined_call_operand.vmem [shape: bf16[256,64], index: 3, kind: input, shape index: {}]
  %s4 = inlined_call_operand.vmem [shape: bf16[8,32], index: 4, kind: input, shape index: {}]
  %s5 = inlined_call_operand.vmem [shape: f32[8,1], index: 5, kind: input, shape index: {}]
  %s6 = inlined_call_operand.vmem [shape: bf16[8,32], index: 6, kind: input, shape index: {}]
  %s7 = inlined_call_operand.vmem [shape: f32[8,1], index: 7, kind: input, shape index: {}]
  %s8 = inlined_call_operand.vmem [shape: bf16[8,32], index: 8, kind: input, shape index: {}]
  %s9 = inlined_call_operand.vmem [shape: f32[8,1], index: 9, kind: input, shape index: {}]
  %s10 = inlined_call_operand.vmem [shape: f32[32,8], index: 10, kind: input, shape index: {}]
  %s11 = inlined_call_operand.vmem [shape: f32[32,1], index: 11, kind: input, shape index: {}]
  %s12 = inlined_call_operand.vmem [shape: f32[64,64], index: 12, kind: output, shape index: {}]
  %s13 = sld [smem:[#allocation0]]
  $region81: #{self_attention_forward.1} parent=0
    _
  %s15 = ssub.s32 1, %s13
  %s16 = scalar_select 0, %s15, %s13
  loop: start=0, step=1, limit=4
  $region2: #{self_attention_forward.1} parent=0 // loop_pre_header
    _
  $region3: #{self_attention_forward.1} parent=0 // loop_header
    %s18 = sphi 0, %s22
    %p19 = scmp.ge.s32.totalorder %s18, 4
    %s28 = sphi 0, %s30
    %s31 = sphi 0, %s28
    %s32 = sphi 0, %s31
    %s48 = sphi 0, %s32
    %s54 = sphi 0, %s56
    %s57 = sphi 0, %s54
    %s58 = sphi 0, %s57
    %s74 = sphi 0, %s58
    %s80 = sphi 0, %s82
    %s83 = sphi 0, %s80
    %s84 = sphi 0, %s83
    %s100 = sphi 0, %s84
    %s104 = sphi 0, %s104
    %s106 = sphi 0, %s104
    %s107 = sphi 0, %s106
    %s121 = sphi 0, %s107
    %s125 = sphi 0, %s125
    %s127 = sphi 0, %s125
    %s128 = sphi 0, %s127
    %s142 = sphi 0, %s128
    %s146 = sphi 0, %s146
    %s148 = sphi 0, %s146
    %s149 = sphi 0, %s148
    %s163 = sphi 0, %s149
    %s167 = sphi 0, %s167
    %s169 = sphi 0, %s167
    %s170 = sphi 0, %s169
    %s184 = sphi 0, %s170
    %s188 = sphi 0, %s188
    %s190 = sphi 0, %s188
    %s191 = sphi 0, %s190
    %s205 = sphi 0, %s191
    %s209 = sphi 0, %s209
    %s211 = sphi 0, %s209
    %s212 = sphi 0, %s211
    %s226 = sphi 0, %s212
    %s230 = sphi 0, %s230
    %s232 = sphi 0, %s230
    %s233 = sphi 0, %s232
    %s247 = sphi 0, %s233
    %s251 = sphi 0, %s251
    %s253 = sphi 0, %s251
    %s254 = sphi 0, %s253
    %s268 = sphi 0, %s254
    %s272 = sphi 0, %s272
    %s274 = sphi 0, %s272
    %s275 = sphi 0, %s274
    %s289 = sphi 0, %s275
    %s295 = sphi 0, %s297
    %s298 = sphi 0, %s295
    %s299 = sphi 0, %s298
    %s315 = sphi 0, %s299
  $region4: #{self_attention_forward.1} parent=0 // loop_header_branch
    %21 = sbr.rel (%p19) target = $region8
  $region5: #{self_attention_forward.1} parent=0 // loop_body
    %s23 = ssub.s32 %s18, 1
    %s24 = ssub.s32 %s18, 2
    %s25 = sadd.s32 %s18, 1
    %s26 = ssub.s32 %s18, %s25
    %p27 = scmp.eq.s32.totalorder %s26, 0
    %s29 = sadd.s32 %s28, 1
    %s30 = scalar_select %p27, %s28, %s29
    %p33 = pneg %p27
    %p34 = scmp.eq.s32.totalorder %s18, 1
    %p35 = por %p33, %p34
    %p36 = scmp.ne.s32.totalorder %s28, %s31
    %p37 = scmp.eq.s32.totalorder %s18, 0
    %p38 = por %p36, %p37
    %p39 = scmp.ne.s32.totalorder %s28, %s31
    %p40 = scmp.eq.s32.totalorder %s23, 1
    %p41 = por %p39, %p40
    %p42 = scmp.ne.s32.totalorder %s31, %s32
    %p43 = scmp.eq.s32.totalorder %s23, 0
    %p44 = por %p42, %p43
    %p45 = scmp.ne.s32.totalorder %s31, %s32
    %p46 = scmp.eq.s32.totalorder %s24, 1
    %p47 = por %p45, %p46
    %p49 = scmp.ne.s32.totalorder %s32, %s48
    %p50 = scmp.eq.s32.totalorder %s24, 0
    %p51 = por %p49, %p50
    %s52 = ssub.s32 %s18, %s25
    %p53 = scmp.eq.s32.totalorder %s52, 0
    %s55 = sadd.s32 %s54, 1
    %s56 = scalar_select %p53, %s54, %s55
    %p59 = pneg %p53
    %p60 = scmp.eq.s32.totalorder %s18, 1
    %p61 = por %p59, %p60
    %p62 = scmp.ne.s32.totalorder %s54, %s57
    %p63 = scmp.eq.s32.totalorder %s18, 0
    %p64 = por %p62, %p63
    %p65 = scmp.ne.s32.totalorder %s54, %s57
    %p66 = scmp.eq.s32.totalorder %s23, 1
    %p67 = por %p65, %p66
    %p68 = scmp.ne.s32.totalorder %s57, %s58
    %p69 = scmp.eq.s32.totalorder %s23, 0
    %p70 = por %p68, %p69
    %p71 = scmp.ne.s32.totalorder %s57, %s58
    %p72 = scmp.eq.s32.totalorder %s24, 1
    %p73 = por %p71, %p72
    %p75 = scmp.ne.s32.totalorder %s58, %s74
    %p76 = scmp.eq.s32.totalorder %s24, 0
    %p77 = por %p75, %p76
    %s78 = ssub.s32 %s18, %s25
    %p79 = scmp.eq.s32.totalorder %s78, 0
    %s81 = sadd.s32 %s80, 1
    %s82 = scalar_select %p79, %s80, %s81
    %p85 = pneg %p79
    %p86 = scmp.eq.s32.totalorder %s18, 1
    %p87 = por %p85, %p86
    %p88 = scmp.ne.s32.totalorder %s80, %s83
    %p89 = scmp.eq.s32.totalorder %s18, 0
    %p90 = por %p88, %p89
    %p91 = scmp.ne.s32.totalorder %s80, %s83
    %p92 = scmp.eq.s32.totalorder %s23, 1
    %p93 = por %p91, %p92
    %p94 = scmp.ne.s32.totalorder %s83, %s84
    %p95 = scmp.eq.s32.totalorder %s23, 0
    %p96 = por %p94, %p95
    %p97 = scmp.ne.s32.totalorder %s83, %s84
    %p98 = scmp.eq.s32.totalorder %s24, 1
    %p99 = por %p97, %p98
    %p101 = scmp.ne.s32.totalorder %s84, %s100
    %p102 = scmp.eq.s32.totalorder %s24, 0
    %p103 = por %p101, %p102
    %s105 = sadd.s32 %s104, 1
    %p108 = scmp.eq.s32.totalorder %s18, 1
    %p109 = scmp.ne.s32.totalorder %s104, %s106
    %p110 = scmp.eq.s32.totalorder %s18, 0
    %p111 = por %p109, %p110
    %p112 = scmp.ne.s32.totalorder %s104, %s106
    %p113 = scmp.eq.s32.totalorder %s23, 1
    %p114 = por %p112, %p113
    %p115 = scmp.ne.s32.totalorder %s106, %s107
    %p116 = scmp.eq.s32.totalorder %s23, 0
    %p117 = por %p115, %p116
    %p118 = scmp.ne.s32.totalorder %s106, %s107
    %p119 = scmp.eq.s32.totalorder %s24, 1
    %p120 = por %p118, %p119
    %p122 = scmp.ne.s32.totalorder %s107, %s121
    %p123 = scmp.eq.s32.totalorder %s24, 0
    %p124 = por %p122, %p123
    %s126 = sadd.s32 %s125, 1
    %p129 = scmp.eq.s32.totalorder %s18, 1
    %p130 = scmp.ne.s32.totalorder %s125, %s127
    %p131 = scmp.eq.s32.totalorder %s18, 0
    %p132 = por %p130, %p131
    %p133 = scmp.ne.s32.totalorder %s125, %s127
    %p134 = scmp.eq.s32.totalorder %s23, 1
    %p135 = por %p133, %p134
    %p136 = scmp.ne.s32.totalorder %s127, %s128
    %p137 = scmp.eq.s32.totalorder %s23, 0
    %p138 = por %p136, %p137
    %p139 = scmp.ne.s32.totalorder %s127, %s128
    %p140 = scmp.eq.s32.totalorder %s24, 1
    %p141 = por %p139, %p140
    %p143 = scmp.ne.s32.totalorder %s128, %s142
    %p144 = scmp.eq.s32.totalorder %s24, 0
    %p145 = por %p143, %p144
    %s147 = sadd.s32 %s146, 1
    %p150 = scmp.eq.s32.totalorder %s18, 1
    %p151 = scmp.ne.s32.totalorder %s146, %s148
    %p152 = scmp.eq.s32.totalorder %s18, 0
    %p153 = por %p151, %p152
    %p154 = scmp.ne.s32.totalorder %s146, %s148
    %p155 = scmp.eq.s32.totalorder %s23, 1
    %p156 = por %p154, %p155
    %p157 = scmp.ne.s32.totalorder %s148, %s149
    %p158 = scmp.eq.s32.totalorder %s23, 0
    %p159 = por %p157, %p158
    %p160 = scmp.ne.s32.totalorder %s148, %s149
    %p161 = scmp.eq.s32.totalorder %s24, 1
    %p162 = por %p160, %p161
    %p164 = scmp.ne.s32.totalorder %s149, %s163
    %p165 = scmp.eq.s32.totalorder %s24, 0
    %p166 = por %p164, %p165
    %s168 = sadd.s32 %s167, 1
    %p171 = scmp.eq.s32.totalorder %s18, 1
    %p172 = scmp.ne.s32.totalorder %s167, %s169
    %p173 = scmp.eq.s32.totalorder %s18, 0
    %p174 = por %p172, %p173
    %p175 = scmp.ne.s32.totalorder %s167, %s169
    %p176 = scmp.eq.s32.totalorder %s23, 1
    %p177 = por %p175, %p176
    %p178 = scmp.ne.s32.totalorder %s169, %s170
    %p179 = scmp.eq.s32.totalorder %s23, 0
    %p180 = por %p178, %p179
    %p181 = scmp.ne.s32.totalorder %s169, %s170
    %p182 = scmp.eq.s32.totalorder %s24, 1
    %p183 = por %p181, %p182
    %p185 = scmp.ne.s32.totalorder %s170, %s184
    %p186 = scmp.eq.s32.totalorder %s24, 0
    %p187 = por %p185, %p186
    %s189 = sadd.s32 %s188, 1
    %p192 = scmp.eq.s32.totalorder %s18, 1
    %p193 = scmp.ne.s32.totalorder %s188, %s190
    %p194 = scmp.eq.s32.totalorder %s18, 0
    %p195 = por %p193, %p194
    %p196 = scmp.ne.s32.totalorder %s188, %s190
    %p197 = scmp.eq.s32.totalorder %s23, 1
    %p198 = por %p196, %p197
    %p199 = scmp.ne.s32.totalorder %s190, %s191
    %p200 = scmp.eq.s32.totalorder %s23, 0
    %p201 = por %p199, %p200
    %p202 = scmp.ne.s32.totalorder %s190, %s191
    %p203 = scmp.eq.s32.totalorder %s24, 1
    %p204 = por %p202, %p203
    %p206 = scmp.ne.s32.totalorder %s191, %s205
    %p207 = scmp.eq.s32.totalorder %s24, 0
    %p208 = por %p206, %p207
    %s210 = sadd.s32 %s209, 1
    %p213 = scmp.eq.s32.totalorder %s18, 1
    %p214 = scmp.ne.s32.totalorder %s209, %s211
    %p215 = scmp.eq.s32.totalorder %s18, 0
    %p216 = por %p214, %p215
    %p217 = scmp.ne.s32.totalorder %s209, %s211
    %p218 = scmp.eq.s32.totalorder %s23, 1
    %p219 = por %p217, %p218
    %p220 = scmp.ne.s32.totalorder %s211, %s212
    %p221 = scmp.eq.s32.totalorder %s23, 0
    %p222 = por %p220, %p221
    %p223 = scmp.ne.s32.totalorder %s211, %s212
    %p224 = scmp.eq.s32.totalorder %s24, 1
    %p225 = por %p223, %p224
    %p227 = scmp.ne.s32.totalorder %s212, %s226
    %p228 = scmp.eq.s32.totalorder %s24, 0
    %p229 = por %p227, %p228
    %s231 = sadd.s32 %s230, 1
    %p234 = scmp.eq.s32.totalorder %s18, 1
    %p235 = scmp.ne.s32.totalorder %s230, %s232
    %p236 = scmp.eq.s32.totalorder %s18, 0
    %p237 = por %p235, %p236
    %p238 = scmp.ne.s32.totalorder %s230, %s232
    %p239 = scmp.eq.s32.totalorder %s23, 1
    %p240 = por %p238, %p239
    %p241 = scmp.ne.s32.totalorder %s232, %s233
    %p242 = scmp.eq.s32.totalorder %s23, 0
    %p243 = por %p241, %p242
    %p244 = scmp.ne.s32.totalorder %s232, %s233
    %p245 = scmp.eq.s32.totalorder %s24, 1
    %p246 = por %p244, %p245
    %p248 = scmp.ne.s32.totalorder %s233, %s247
    %p249 = scmp.eq.s32.totalorder %s24, 0
    %p250 = por %p248, %p249
    %s252 = sadd.s32 %s251, 1
    %p255 = scmp.eq.s32.totalorder %s18, 1
    %p256 = scmp.ne.s32.totalorder %s251, %s253
    %p257 = scmp.eq.s32.totalorder %s18, 0
    %p258 = por %p256, %p257
    %p259 = scmp.ne.s32.totalorder %s251, %s253
    %p260 = scmp.eq.s32.totalorder %s23, 1
    %p261 = por %p259, %p260
    %p262 = scmp.ne.s32.totalorder %s253, %s254
    %p263 = scmp.eq.s32.totalorder %s23, 0
    %p264 = por %p262, %p263
    %p265 = scmp.ne.s32.totalorder %s253, %s254
    %p266 = scmp.eq.s32.totalorder %s24, 1
    %p267 = por %p265, %p266
    %p269 = scmp.ne.s32.totalorder %s254, %s268
    %p270 = scmp.eq.s32.totalorder %s24, 0
    %p271 = por %p269, %p270
    %s273 = sadd.s32 %s272, 1
    %p276 = scmp.eq.s32.totalorder %s18, 1
    %p277 = scmp.ne.s32.totalorder %s272, %s274
    %p278 = scmp.eq.s32.totalorder %s18, 0
    %p279 = por %p277, %p278
    %p280 = scmp.ne.s32.totalorder %s272, %s274
    %p281 = scmp.eq.s32.totalorder %s23, 1
    %p282 = por %p280, %p281
    %p283 = scmp.ne.s32.totalorder %s274, %s275
    %p284 = scmp.eq.s32.totalorder %s23, 0
    %p285 = por %p283, %p284
    %p286 = scmp.ne.s32.totalorder %s274, %s275
    %p287 = scmp.eq.s32.totalorder %s24, 1
    %p288 = por %p286, %p287
    %p290 = scmp.ne.s32.totalorder %s275, %s289
    %p291 = scmp.eq.s32.totalorder %s24, 0
    %p292 = por %p290, %p291
    %s293 = ssub.s32 %s18, %s25
    %p294 = scmp.eq.s32.totalorder %s293, 0
    %s296 = sadd.s32 %s295, 1
    %s297 = scalar_select %p294, %s295, %s296
    %p300 = pneg %p294
    %p301 = scmp.eq.s32.totalorder %s18, 1
    %p302 = por %p300, %p301
    %p303 = scmp.ne.s32.totalorder %s295, %s298
    %p304 = scmp.eq.s32.totalorder %s18, 0
    %p305 = por %p303, %p304
    %p306 = scmp.ne.s32.totalorder %s295, %s298
    %p307 = scmp.eq.s32.totalorder %s23, 1
    %p308 = por %p306, %p307
    %p309 = scmp.ne.s32.totalorder %s298, %s299
    %p310 = scmp.eq.s32.totalorder %s23, 0
    %p311 = por %p309, %p310
    %p312 = scmp.ne.s32.totalorder %s298, %s299
    %p313 = scmp.eq.s32.totalorder %s24, 1
    %p314 = por %p312, %p313
    %p316 = scmp.ne.s32.totalorder %s299, %s315
    %p317 = scmp.eq.s32.totalorder %s24, 0
    %p318 = por %p316, %p317
    %p319 = scmp.le.s32.totalorder 1, %s18
    %p320 = scmp.lt.s32.totalorder %s18, 3
    %p321 = pnand %p319, %p320
    %p322 = pneg %p321
    // Predicated region
    $region9: #{self_attention_forward.1} parent=5 // pred_check
      _
    $region10: #{self_attention_forward.1} parent=5 // pred_check_branch
      %324 = sbr.rel (%p321) target = $region12
    $region11: #{self_attention_forward.1} parent=5 // pred_region
      %s325 = ssub.s32 %s18, 1
      // Predicated region
      $region13: #{self_attention_forward.1} parent=11 // pred_check
        %p326 = pneg %p117
      $region14: #{self_attention_forward.1} parent=11 // pred_check_branch
        %328 = sbr.rel (%p326) target = $region16
      $region15: #{self_attention_forward.1} parent=11 // pred_region
        _
      $region16: #{self_attention_forward.1} parent=11 // pred_fallthru
        _
      // Predicated region
      $region17: #{self_attention_forward.1} parent=11 // pred_check
        %p329 = pneg %p138
      $region18: #{self_attention_forward.1} parent=11 // pred_check_branch
        %331 = sbr.rel (%p329) target = $region20
      $region19: #{self_attention_forward.1} parent=11 // pred_region
        _
      $region20: #{self_attention_forward.1} parent=11 // pred_fallthru
        _
      // Predicated region
      $region21: #{self_attention_forward.1} parent=11 // pred_check
        %p332 = pneg %p159
      $region22: #{self_attention_forward.1} parent=11 // pred_check_branch
        %334 = sbr.rel (%p332) target = $region24
      $region23: #{self_attention_forward.1} parent=11 // pred_region
        _
      $region24: #{self_attention_forward.1} parent=11 // pred_fallthru
        _
      // Predicated region
      $region25: #{self_attention_forward.1} parent=11 // pred_check
        %p335 = pneg %p180
      $region26: #{self_attention_forward.1} parent=11 // pred_check_branch
        %337 = sbr.rel (%p335) target = $region28
      $region27: #{self_attention_forward.1} parent=11 // pred_region
        _
      $region28: #{self_attention_forward.1} parent=11 // pred_fallthru
        _
      // Predicated region
      $region29: #{self_attention_forward.1} parent=11 // pred_check
        %p338 = pneg %p201
      $region30: #{self_attention_forward.1} parent=11 // pred_check_branch
        %340 = sbr.rel (%p338) target = $region32
      $region31: #{self_attention_forward.1} parent=11 // pred_region
        _
      $region32: #{self_attention_forward.1} parent=11 // pred_fallthru
        _
      // Predicated region
      $region33: #{self_attention_forward.1} parent=11 // pred_check
        %p341 = pneg %p222
      $region34: #{self_attention_forward.1} parent=11 // pred_check_branch
        %343 = sbr.rel (%p341) target = $region36
      $region35: #{self_attention_forward.1} parent=11 // pred_region
        _
      $region36: #{self_attention_forward.1} parent=11 // pred_fallthru
        _
      // Predicated region
      $region37: #{self_attention_forward.1} parent=11 // pred_check
        %p344 = pneg %p243
      $region38: #{self_attention_forward.1} parent=11 // pred_check_branch
        %346 = sbr.rel (%p344) target = $region40
      $region39: #{self_attention_forward.1} parent=11 // pred_region
        _
      $region40: #{self_attention_forward.1} parent=11 // pred_fallthru
        _
      // Predicated region
      $region41: #{self_attention_forward.1} parent=11 // pred_check
        %p347 = pneg %p264
      $region42: #{self_attention_forward.1} parent=11 // pred_check_branch
        %349 = sbr.rel (%p347) target = $region44
      $region43: #{self_attention_forward.1} parent=11 // pred_region
        _
      $region44: #{self_attention_forward.1} parent=11 // pred_fallthru
        _
      // Predicated region
      $region45: #{self_attention_forward.1} parent=11 // pred_check
        %p350 = pneg %p285
      $region46: #{self_attention_forward.1} parent=11 // pred_check_branch
        %352 = sbr.rel (%p350) target = $region48
      $region47: #{self_attention_forward.1} parent=11 // pred_region
        _
      $region48: #{self_attention_forward.1} parent=11 // pred_fallthru
        _
    $region12: #{self_attention_forward.1} parent=5 // pred_fallthru
      _
    %p353 = scmp.lt.s32.totalorder %s18, 2
    // Predicated region
    $region49: #{self_attention_forward.1} parent=5 // pred_check
      %p354 = pneg %p353
    $region50: #{self_attention_forward.1} parent=5 // pred_check_branch
      %356 = sbr.rel (%p354) target = $region52
    $region51: #{self_attention_forward.1} parent=5 // pred_region
      // Predicated region
      $region53: #{self_attention_forward.1} parent=51 // pred_check
        %p357 = pneg %p38
      $region54: #{self_attention_forward.1} parent=51 // pred_check_branch
        %359 = sbr.rel (%p357) target = $region56
      $region55: #{self_attention_forward.1} parent=51 // pred_region
        %s360 = smul.u32 4, %s18
        %p361 = scmp.lt.s32.totalorder %s360, 7
        %s362 = scalar_select %p361, %s360, 7
        %s363 = smul.addr %s362, 2
        %s364 = smul.addr %s363, 8
        %s365 = scalar_lea.vmem %s0, %s364
        %s366 = smul.u32 4, %s18
      $region56: #{self_attention_forward.1} parent=51 // pred_fallthru
        _
      // Predicated region
      $region57: #{self_attention_forward.1} parent=51 // pred_check
        %p367 = pneg %p64
      $region58: #{self_attention_forward.1} parent=51 // pred_check_branch
        %369 = sbr.rel (%p367) target = $region60
      $region59: #{self_attention_forward.1} parent=51 // pred_region
        %s370 = smul.u32 4, %s18
        %p371 = scmp.lt.s32.totalorder %s370, 7
        %s372 = scalar_select %p371, %s370, 7
        %s373 = smul.addr %s372, 2
        %s374 = smul.addr %s373, 8
        %s375 = scalar_lea.vmem %s1, %s374
        %s376 = smul.u32 4, %s18
      $region60: #{self_attention_forward.1} parent=51 // pred_fallthru
        _
      // Predicated region
      $region61: #{self_attention_forward.1} parent=51 // pred_check
        %p377 = pneg %p90
      $region62: #{self_attention_forward.1} parent=51 // pred_check_branch
        %379 = sbr.rel (%p377) target = $region64
      $region63: #{self_attention_forward.1} parent=51 // pred_region
        %s380 = smul.u32 4, %s18
        %p381 = scmp.lt.s32.totalorder %s380, 7
        %s382 = scalar_select %p381, %s380, 7
        %s383 = smul.addr %s382, 2
        %s384 = smul.addr %s383, 8
        %s385 = scalar_lea.vmem %s2, %s384
        %s386 = smul.u32 4, %s18
      $region64: #{self_attention_forward.1} parent=51 // pred_fallthru
        _
    $region52: #{self_attention_forward.1} parent=5 // pred_fallthru
      _
    %p387 = scmp.le.s32.totalorder 1, %s18
    %p388 = scmp.lt.s32.totalorder %s18, 3
    %p389 = pnand %p387, %p388
    %p390 = pneg %p389
    // Predicated region
    $region65: #{self_attention_forward.1} parent=5 // pred_check
      _
    $region66: #{self_attention_forward.1} parent=5 // pred_check_branch
      %392 = sbr.rel (%p389) target = $region68
    $region67: #{self_attention_forward.1} parent=5 // pred_region
      %s393 = ssub.s32 %s18, 1
      %s394 = smul.u32 4, %s23
      %p395 = scmp.lt.s32.totalorder %s394, 7
      %s396 = scalar_select %p395, %s394, 7
      %s397 = smul.addr %s396, 2
      %s398 = smul.addr %s397, 8
      %s399 = scalar_lea.vmem %s0, %s398
      %p400 = pneg %p44
      %p401 = pneg %p41
      %s402 = smul.u32 4, %s23
      %p403 = scmp.lt.s32.totalorder %s402, 7
      %s404 = scalar_select %p403, %s402, 7
      %s405 = smul.addr %s404, 2
      %s406 = smul.addr %s405, 8
      %s407 = scalar_lea.vmem %s1, %s406
      %p408 = pneg %p70
      %p409 = pneg %p67
      %s410 = smul.u32 4, %s23
      %p411 = scmp.lt.s32.totalorder %s410, 7
      %s412 = scalar_select %p411, %s410, 7
      %s413 = smul.addr %s412, 2
      %s414 = smul.addr %s413, 8
      %s415 = scalar_lea.vmem %s2, %s414
      %p416 = pneg %p96
      %p417 = pneg %p93
      %p418 = pneg %p117
      %p419 = pneg %p114
      %p420 = pneg %p138
      %p421 = pneg %p135
      %p422 = pneg %p159
      %p423 = pneg %p156
      %p424 = pneg %p180
      %p425 = pneg %p177
      %p426 = pneg %p201
      %p427 = pneg %p198
      %p428 = pneg %p222
      %p429 = pneg %p219
      %p430 = pneg %p243
      %p431 = pneg %p240
      %p432 = pneg %p264
      %p433 = pneg %p261
      %p434 = pneg %p285
      %p435 = pneg %p282
      %p436 = pneg %p311
      %p437 = pneg %p308
      %s438 = smul.u32 4, %s23
      %p439 = scmp.lt.s32.totalorder %s438, 7
      %s440 = scalar_select %p439, %s438, 7
      %s441 = smul.addr %s440, 8
      %s442 = scalar_lea.vmem %s12, %s441
      %s443 = smul.u32 4, %s23
      %p444 = scmp.lt.s32.totalorder %s443, 7
      %s445 = scalar_select %p444, %s443, 7
      %s446 = smul.addr %s445, 2
      %s447 = smul.addr %s446, 8
      %s448 = scalar_lea.vmem %s0, %s447
      %s449 = smul.u32 4, %s23
      %s450 = smul.u32 4, %s23
      %p451 = scmp.lt.s32.totalorder %s450, 7
      %s452 = scalar_select %p451, %s450, 7
      %s453 = smul.addr %s452, 2
      %s454 = smul.addr %s453, 8
      %s455 = scalar_lea.vmem %s1, %s454
      %s456 = smul.u32 4, %s23
      %s457 = smul.u32 4, %s23
      %p458 = scmp.lt.s32.totalorder %s457, 7
      %s459 = scalar_select %p458, %s457, 7
      %s460 = smul.addr %s459, 2
      %s461 = smul.addr %s460, 8
      %s462 = scalar_lea.vmem %s2, %s461
      %s463 = smul.u32 4, %s23
      %s464 = smul.u32 4, %s23
      %p465 = scmp.lt.s32.totalorder %s464, 7
      %s466 = scalar_select %p465, %s464, 7
      %s467 = smul.addr %s466, 8
      %s468 = scalar_lea.vmem %s12, %s467
      %s469 = smul.u32 4, %s23
      %v471 = vld [vmem:[%s3] sm:$0xf]
      %v472 = vld [vmem:[%s3 + $0x4] sm:$0xf]
      %v473 = vld [vmem:[%s3 + $0x8] sm:$0xf]
      %v474 = vld [vmem:[%s3 + $0xc] sm:$0xf]
      %v475 = vld [vmem:[%s3 + $0x10] sm:$0xf]
      %v476 = vld [vmem:[%s3 + $0x14] sm:$0xf]
      %v477 = vld [vmem:[%s3 + $0x18] sm:$0xf]
      %v478 = vld [vmem:[%s3 + $0x1c] sm:$0xf]
      %v479 = vld [vmem:[%s3 + $0x20] sm:$0xf]
      %v480 = vld [vmem:[%s3 + $0x24] sm:$0xf]
      %v481 = vld [vmem:[%s3 + $0x28] sm:$0xf]
      %v482 = vld [vmem:[%s3 + $0x2c] sm:$0xf]
      %v483 = vld [vmem:[%s3 + $0x30] sm:$0xf]
      %v484 = vld [vmem:[%s3 + $0x34] sm:$0xf]
      %v485 = vld [vmem:[%s3 + $0x38] sm:$0xf]
      %v486 = vld [vmem:[%s3 + $0x3c] sm:$0xf]
      %v487 = vld [vmem:[%s3 + $0x40] sm:$0xf]
      %v488 = vld [vmem:[%s3 + $0x44] sm:$0xf]
      %v489 = vld [vmem:[%s3 + $0x48] sm:$0xf]
      %v490 = vld [vmem:[%s3 + $0x4c] sm:$0xf]
      %v491 = vld [vmem:[%s3 + $0x50] sm:$0xf]
      %v492 = vld [vmem:[%s3 + $0x54] sm:$0xf]
      %v493 = vld [vmem:[%s3 + $0x58] sm:$0xf]
      %v494 = vld [vmem:[%s3 + $0x5c] sm:$0xf]
      %v495 = vld [vmem:[%s3 + $0x60] sm:$0xf]
      %v496 = vld [vmem:[%s3 + $0x64] sm:$0xf]
      %v497 = vld [vmem:[%s3 + $0x68] sm:$0xf]
      %v498 = vld [vmem:[%s3 + $0x6c] sm:$0xf]
      %v499 = vld [vmem:[%s3 + $0x70] sm:$0xf]
      %v500 = vld [vmem:[%s3 + $0x74] sm:$0xf]
      %v501 = vld [vmem:[%s3 + $0x78] sm:$0xf]
      %v502 = vld [vmem:[%s3 + $0x7c] sm:$0xf]
      %v503 = vld [vmem:[%s448] sm:$0xff]
      %v504 = vld [vmem:[%s448 + $0x8] sm:$0xff]
      %v505 = vld [vmem:[%s448 + $0x10] sm:$0xff]
      %v506 = vld [vmem:[%s448 + $0x18] sm:$0xff]
      %v507 = vld [vmem:[%s448 + $0x20] sm:$0xff]
      %v508 = vld [vmem:[%s448 + $0x28] sm:$0xff]
      %v509 = vld [vmem:[%s448 + $0x30] sm:$0xff]
      %v510 = vld [vmem:[%s448 + $0x38] sm:$0xff]
      %v511 = vpack.c.bf16 %v505, %v503
      %v512 = vpack.c.bf16 %v506, %v504
      %v513 = vpack.c.bf16 %v509, %v507
      %v514 = vpack.c.bf16 %v510, %v508
      %v547 = vunpack.c.l.b16 %v471
      %v548 = vunpack.c.l.b16 %v472
      %v549 = vunpack.c.l.b16 %v473
      %v550 = vunpack.c.l.b16 %v474
      %v551 = vunpack.c.l.b16 %v475
      %v552 = vunpack.c.l.b16 %v476
      %v553 = vunpack.c.l.b16 %v477
      %v554 = vunpack.c.l.b16 %v478
      %v555 = vunpack.c.l.b16 %v479
      %v556 = vunpack.c.l.b16 %v480
      %v557 = vunpack.c.l.b16 %v481
      %v558 = vunpack.c.l.b16 %v482
      %v559 = vunpack.c.l.b16 %v483
      %v560 = vunpack.c.l.b16 %v484
      %v561 = vunpack.c.l.b16 %v485
      %v562 = vunpack.c.l.b16 %v486
      %v563 = vunpack.c.l.b16 %v487
      %v564 = vunpack.c.l.b16 %v488
      %v565 = vunpack.c.l.b16 %v489
      %v566 = vunpack.c.l.b16 %v490
      %v567 = vunpack.c.l.b16 %v491
      %v568 = vunpack.c.l.b16 %v492
      %v569 = vunpack.c.l.b16 %v493
      %v570 = vunpack.c.l.b16 %v494
      %v571 = vunpack.c.l.b16 %v495
      %v572 = vunpack.c.l.b16 %v496
      %v573 = vunpack.c.l.b16 %v497
      %v574 = vunpack.c.l.b16 %v498
      %v575 = vunpack.c.l.b16 %v499
      %v576 = vunpack.c.l.b16 %v500
      %v577 = vunpack.c.l.b16 %v501
      %v578 = vunpack.c.l.b16 %v502
      %v579 = vpack.c.b16 %v548, %v547
      %v580 = vpack.c.b16 %v550, %v549
      %v581 = vpack.c.b16 %v552, %v551
      %v582 = vpack.c.b16 %v554, %v553
      %v583 = vpack.c.b16 %v556, %v555
      %v584 = vpack.c.b16 %v558, %v557
      %v585 = vpack.c.b16 %v560, %v559
      %v586 = vpack.c.b16 %v562, %v561
      %v587 = vpack.c.b16 %v564, %v563
      %v588 = vpack.c.b16 %v566, %v565
      %v589 = vpack.c.b16 %v568, %v567
      %v590 = vpack.c.b16 %v570, %v569
      %v591 = vpack.c.b16 %v572, %v571
      %v592 = vpack.c.b16 %v574, %v573
      %v593 = vpack.c.b16 %v576, %v575
      %v594 = vpack.c.b16 %v578, %v577
      %611 = vmatprep.subr.bf16.mxu0 0
      %612 = vmatpush1.bf16.msra.mxu0 %v579
      %613 = vmatprep.subr.bf16.mxu0 0
      %614 = vmatpush1.bf16.msra.mxu0 %v580
      %615 = vmatprep.subr.bf16.mxu0 0
      %616 = vmatpush1.bf16.msra.mxu0 %v581
      %617 = vmatprep.subr.bf16.mxu0 0
      %618 = vmatpush1.bf16.msra.mxu0 %v582
      %619 = vmatprep.subr.bf16.mxu0 0
      %620 = vmatpush1.bf16.msra.mxu0 %v583
      %621 = vmatprep.subr.bf16.mxu0 0
      %622 = vmatpush1.bf16.msra.mxu0 %v584
      %623 = vmatprep.subr.bf16.mxu0 0
      %624 = vmatpush1.bf16.msra.mxu0 %v585
      %625 = vmatprep.subr.bf16.mxu0 0
      %626 = vmatpush1.bf16.msra.mxu0 %v586
      %627 = vmatprep.subr.bf16.mxu0 0
      %628 = vmatpush1.bf16.msra.mxu0 %v587
      %629 = vmatprep.subr.bf16.mxu0 0
      %630 = vmatpush1.bf16.msra.mxu0 %v588
      %631 = vmatprep.subr.bf16.mxu0 0
      %632 = vmatpush1.bf16.msra.mxu0 %v589
      %633 = vmatprep.subr.bf16.mxu0 0
      %634 = vmatpush1.bf16.msra.mxu0 %v590
      %635 = vmatprep.subr.bf16.mxu0 0
      %636 = vmatpush1.bf16.msra.mxu0 %v591
      %637 = vmatprep.subr.bf16.mxu0 0
      %638 = vmatpush1.bf16.msra.mxu0 %v592
      %639 = vmatprep.subr.bf16.mxu0 0
      %640 = vmatpush1.bf16.msra.mxu0 %v593
      %641 = vmatprep.subr.bf16.mxu0 0
      %642 = vmatpush1.bf16.msra.mxu0 %v594
      %643 = vmatprep.mubr.bf16.mxu0 %v512
      %644 = vmatmul.mubr.bf16.gmra.mrb[0].mxu0 %v511
      %v645 = vpop.f32.mrb[0].mxu0
      %v646 = vadd.f32 0.0, %v645
      %v647 = vpop.f32.mrb[0].mxu0
      %v648 = vpop.f32.mrb[0].mxu0
      %v649 = vadd.f32 0.0, %v648
      %v650 = vpop.f32.mrb[0].mxu0
      %651 = vmatprep.mubr.bf16.mxu0 %v514
      %652 = vmatmul.mubr.bf16.gmra.mrb[0].mxu0 %v513
      %v653 = vpop.f32.mrb[0].mxu0
      %v654 = vadd.f32 0.0, %v653
      %v655 = vpop.f32.mrb[0].mxu0
      %v656 = vpop.f32.mrb[0].mxu0
      %v657 = vadd.f32 0.0, %v656
      %v658 = vpop.f32.mrb[0].mxu0
      %659 = vdwg.mxu0
      %v660 = vld [vmem:[%s4] sm:$0xf]
      %v661 = vpack.c.bf16 %v649, %v646
      %v662 = vpack.c.bf16 %v657, %v654
      %v663 = vld [vmem:[%s5] sm:$0xff]
      %665 = vset.pattern.permute.xlu0 0
      %666 = vperm.xlu0 %665, %v663
      %v667 = vpop.permute.xlu0 %666
      %vm669 = vcmask 261120
      %v671 = vsel %vm669, %v660, 0
      %673 = vmatprep.subr.bf16.mxu0 0
      %674 = vmatpush1.bf16.msra.mxu0 %v661
      %675 = vmatprep.subr.bf16.mxu0 0
      %676 = vmatpush1.bf16.msra.mxu0 %v662
      %677 = vmatprep.subr.bf16.mxu0 0
      %678 = vmatpush1.bf16.msra.mxu0 0
      %679 = vmatprep.subr.bf16.mxu0 0
      %680 = vmatpush1.bf16.msra.mxu0 0
      %681 = vmatprep.subr.bf16.mxu0 0
      %682 = vmatpush1.bf16.msra.mxu0 0
      %683 = vmatprep.subr.bf16.mxu0 0
      %684 = vmatpush1.bf16.msra.mxu0 0
      %685 = vmatprep.subr.bf16.mxu0 0
      %686 = vmatpush1.bf16.msra.mxu0 0
      %687 = vmatprep.subr.bf16.mxu0 0
      %688 = vmatpush1.bf16.msra.mxu0 0
      %689 = vmatprep.subr.bf16.mxu0 0
      %690 = vmatpush1.bf16.msra.mxu0 0
      %691 = vmatprep.subr.bf16.mxu0 0
      %692 = vmatpush1.bf16.msra.mxu0 0
      %693 = vmatprep.subr.bf16.mxu0 0
      %694 = vmatpush1.bf16.msra.mxu0 0
      %695 = vmatprep.subr.bf16.mxu0 0
      %696 = vmatpush1.bf16.msra.mxu0 0
      %697 = vmatprep.subr.bf16.mxu0 0
      %698 = vmatpush1.bf16.msra.mxu0 0
      %699 = vmatprep.subr.bf16.mxu0 0
      %700 = vmatpush1.bf16.msra.mxu0 0
      %701 = vmatprep.subr.bf16.mxu0 0
      %702 = vmatpush1.bf16.msra.mxu0 0
      %703 = vmatprep.subr.bf16.mxu0 0
      %704 = vmatpush1.bf16.msra.mxu0 0
      %705 = vmatprep.mubr.bf16.mxu0 0
      %706 = vmatmul.mubr.bf16.gmra.mrb[0].mxu0 %v671
      %v707 = vpop.f32.mrb[0].mxu0
      %v708 = vadd.f32 %v667, %v707
      %v709 = vpop.f32.mrb[0].mxu0
      %v710 = vpop.f32.mrb[0].mxu0
      %v711 = vpop.f32.mrb[0].mxu0
      %712 = vdwg.mxu0
      %v713 = vld [vmem:[%s455] sm:$0xff]
      %v714 = vld [vmem:[%s455 + $0x8] sm:$0xff]
      %v715 = vld [vmem:[%s455 + $0x10] sm:$0xff]
      %v716 = vld [vmem:[%s455 + $0x18] sm:$0xff]
      %v717 = vld [vmem:[%s455 + $0x20] sm:$0xff]
      %v718 = vld [vmem:[%s455 + $0x28] sm:$0xff]
      %v719 = vld [vmem:[%s455 + $0x30] sm:$0xff]
      %v720 = vld [vmem:[%s455 + $0x38] sm:$0xff]
      %v721 = vpack.c.bf16 %v715, %v713
      %v722 = vpack.c.bf16 %v716, %v714
      %v723 = vpack.c.bf16 %v719, %v717
      %v724 = vpack.c.bf16 %v720, %v718
      %725 = vmatprep.subr.bf16.mxu0 0
      %726 = vmatpush1.bf16.msra.mxu0 %v579
      %727 = vmatprep.subr.bf16.mxu0 0
      %728 = vmatpush1.bf16.msra.mxu0 %v580
      %729 = vmatprep.subr.bf16.mxu0 0
      %730 = vmatpush1.bf16.msra.mxu0 %v581
      %731 = vmatprep.subr.bf16.mxu0 0
      %732 = vmatpush1.bf16.msra.mxu0 %v582
      %733 = vmatprep.subr.bf16.mxu0 0
      %734 = vmatpush1.bf16.msra.mxu0 %v583
      %735 = vmatprep.subr.bf16.mxu0 0
      %736 = vmatpush1.bf16.msra.mxu0 %v584
      %737 = vmatprep.subr.bf16.mxu0 0
      %738 = vmatpush1.bf16.msra.mxu0 %v585
      %739 = vmatprep.subr.bf16.mxu0 0
      %740 = vmatpush1.bf16.msra.mxu0 %v586
      %741 = vmatprep.subr.bf16.mxu0 0
      %742 = vmatpush1.bf16.msra.mxu0 %v587
      %743 = vmatprep.subr.bf16.mxu0 0
      %744 = vmatpush1.bf16.msra.mxu0 %v588
      %745 = vmatprep.subr.bf16.mxu0 0
      %746 = vmatpush1.bf16.msra.mxu0 %v589
      %747 = vmatprep.subr.bf16.mxu0 0
      %748 = vmatpush1.bf16.msra.mxu0 %v590
      %749 = vmatprep.subr.bf16.mxu0 0
      %750 = vmatpush1.bf16.msra.mxu0 %v591
      %751 = vmatprep.subr.bf16.mxu0 0
      %752 = vmatpush1.bf16.msra.mxu0 %v592
      %753 = vmatprep.subr.bf16.mxu0 0
      %754 = vmatpush1.bf16.msra.mxu0 %v593
      %755 = vmatprep.subr.bf16.mxu0 0
      %756 = vmatpush1.bf16.msra.mxu0 %v594
      %757 = vmatprep.mubr.bf16.mxu0 %v722
      %758 = vmatmul.mubr.bf16.gmra.mrb[0].mxu0 %v721
      %v759 = vpop.f32.mrb[0].mxu0
      %v760 = vadd.f32 0.0, %v759
      %v761 = vpop.f32.mrb[0].mxu0
      %v762 = vpop.f32.mrb[0].mxu0
      %v763 = vadd.f32 0.0, %v762
      %v764 = vpop.f32.mrb[0].mxu0
      %765 = vmatprep.mubr.bf16.mxu0 %v724
      %766 = vmatmul.mubr.bf16.gmra.mrb[0].mxu0 %v723
      %v767 = vpop.f32.mrb[0].mxu0
      %v768 = vadd.f32 0.0, %v767
      %v769 = vpop.f32.mrb[0].mxu0
      %v770 = vpop.f32.mrb[0].mxu0
      %v771 = vadd.f32 0.0, %v770
      %v772 = vpop.f32.mrb[0].mxu0
      %773 = vdwg.mxu0
      %v774 = vld [vmem:[%s6] sm:$0xf]
      %v775 = vpack.c.bf16 %v763, %v760
      %v776 = vpack.c.bf16 %v771, %v768
      %v777 = vld [vmem:[%s7] sm:$0xff]
      %779 = vset.pattern.permute.xlu0 0
      %780 = vperm.xlu0 %779, %v777
      %v781 = vpop.permute.xlu0 %780
      %v784 = vsel %vm669, %v774, 0
      %786 = vmatprep.subr.bf16.mxu0 0
      %787 = vmatpush1.bf16.msra.mxu0 %v775
      %788 = vmatprep.subr.bf16.mxu0 0
      %789 = vmatpush1.bf16.msra.mxu0 %v776
      %790 = vmatprep.subr.bf16.mxu0 0
      %791 = vmatpush1.bf16.msra.mxu0 0
      %792 = vmatprep.subr.bf16.mxu0 0
      %793 = vmatpush1.bf16.msra.mxu0 0
      %794 = vmatprep.subr.bf16.mxu0 0
      %795 = vmatpush1.bf16.msra.mxu0 0
      %796 = vmatprep.subr.bf16.mxu0 0
      %797 = vmatpush1.bf16.msra.mxu0 0
      %798 = vmatprep.subr.bf16.mxu0 0
      %799 = vmatpush1.bf16.msra.mxu0 0
      %800 = vmatprep.subr.bf16.mxu0 0
      %801 = vmatpush1.bf16.msra.mxu0 0
      %802 = vmatprep.subr.bf16.mxu0 0
      %803 = vmatpush1.bf16.msra.mxu0 0
      %804 = vmatprep.subr.bf16.mxu0 0
      %805 = vmatpush1.bf16.msra.mxu0 0
      %806 = vmatprep.subr.bf16.mxu0 0
      %807 = vmatpush1.bf16.msra.mxu0 0
      %808 = vmatprep.subr.bf16.mxu0 0
      %809 = vmatpush1.bf16.msra.mxu0 0
      %810 = vmatprep.subr.bf16.mxu0 0
      %811 = vmatpush1.bf16.msra.mxu0 0
      %812 = vmatprep.subr.bf16.mxu0 0
      %813 = vmatpush1.bf16.msra.mxu0 0
      %814 = vmatprep.subr.bf16.mxu0 0
      %815 = vmatpush1.bf16.msra.mxu0 0
      %816 = vmatprep.subr.bf16.mxu0 0
      %817 = vmatpush1.bf16.msra.mxu0 0
      %818 = vmatprep.mubr.bf16.mxu0 0
      %819 = vmatmul.mubr.bf16.gmra.mrb[0].mxu0 %v784
      %v820 = vpop.f32.mrb[0].mxu0
      %v821 = vadd.f32 %v781, %v820
      %v822 = vpop.f32.mrb[0].mxu0
      %v823 = vpop.f32.mrb[0].mxu0
      %v824 = vpop.f32.mrb[0].mxu0
      %825 = vdwg.mxu0
      %v826 = vld [vmem:[%s462] sm:$0xff]
      %v827 = vld [vmem:[%s462 + $0x8] sm:$0xff]
      %v828 = vld [vmem:[%s462 + $0x10] sm:$0xff]
      %v829 = vld [vmem:[%s462 + $0x18] sm:$0xff]
      %v830 = vld [vmem:[%s462 + $0x20] sm:$0xff]
      %v831 = vld [vmem:[%s462 + $0x28] sm:$0xff]
      %v832 = vld [vmem:[%s462 + $0x30] sm:$0xff]
      %v833 = vld [vmem:[%s462 + $0x38] sm:$0xff]
      %v834 = vpack.c.bf16 %v828, %v826
      %v835 = vpack.c.bf16 %v829, %v827
      %v836 = vpack.c.bf16 %v832, %v830
      %v837 = vpack.c.bf16 %v833, %v831
      %838 = vmatprep.subr.bf16.mxu0 0
      %839 = vmatpush1.bf16.msra.mxu0 %v579
      %840 = vmatprep.subr.bf16.mxu0 0
      %841 = vmatpush1.bf16.msra.mxu0 %v580
      %842 = vmatprep.subr.bf16.mxu0 0
      %843 = vmatpush1.bf16.msra.mxu0 %v581
      %844 = vmatprep.subr.bf16.mxu0 0
      %845 = vmatpush1.bf16.msra.mxu0 %v582
      %846 = vmatprep.subr.bf16.mxu0 0
      %847 = vmatpush1.bf16.msra.mxu0 %v583
      %848 = vmatprep.subr.bf16.mxu0 0
      %849 = vmatpush1.bf16.msra.mxu0 %v584
      %850 = vmatprep.subr.bf16.mxu0 0
      %851 = vmatpush1.bf16.msra.mxu0 %v585
      %852 = vmatprep.subr.bf16.mxu0 0
      %853 = vmatpush1.bf16.msra.mxu0 %v586
      %854 = vmatprep.subr.bf16.mxu0 0
      %855 = vmatpush1.bf16.msra.mxu0 %v587
      %856 = vmatprep.subr.bf16.mxu0 0
      %857 = vmatpush1.bf16.msra.mxu0 %v588
      %858 = vmatprep.subr.bf16.mxu0 0
      %859 = vmatpush1.bf16.msra.mxu0 %v589
      %860 = vmatprep.subr.bf16.mxu0 0
      %861 = vmatpush1.bf16.msra.mxu0 %v590
      %862 = vmatprep.subr.bf16.mxu0 0
      %863 = vmatpush1.bf16.msra.mxu0 %v591
      %864 = vmatprep.subr.bf16.mxu0 0
      %865 = vmatpush1.bf16.msra.mxu0 %v592
      %866 = vmatprep.subr.bf16.mxu0 0
      %867 = vmatpush1.bf16.msra.mxu0 %v593
      %868 = vmatprep.subr.bf16.mxu0 0
      %869 = vmatpush1.bf16.msra.mxu0 %v594
      %870 = vmatprep.mubr.bf16.mxu0 %v835
      %871 = vmatmul.mubr.bf16.gmra.mrb[0].mxu0 %v834
      %v872 = vpop.f32.mrb[0].mxu0
      %v873 = vadd.f32 0.0, %v872
      %v874 = vpop.f32.mrb[0].mxu0
      %v875 = vpop.f32.mrb[0].mxu0
      %v876 = vadd.f32 0.0, %v875
      %v877 = vpop.f32.mrb[0].mxu0
      %878 = vmatprep.mubr.bf16.mxu0 %v837
      %879 = vmatmul.mubr.bf16.gmra.mrb[0].mxu0 %v836
      %v880 = vpop.f32.mrb[0].mxu0
      %v881 = vadd.f32 0.0, %v880
      %v882 = vpop.f32.mrb[0].mxu0
      %v883 = vpop.f32.mrb[0].mxu0
      %v884 = vadd.f32 0.0, %v883
      %v885 = vpop.f32.mrb[0].mxu0
      %886 = vdwg.mxu0
      %v887 = vld [vmem:[%s8] sm:$0xf]
      %v888 = vpack.c.bf16 %v876, %v873
      %v889 = vpack.c.bf16 %v884, %v881
      %v890 = vld [vmem:[%s9] sm:$0xff]
      %892 = vset.pattern.permute.xlu0 0
      %893 = vperm.xlu0 %892, %v890
      %v894 = vpop.permute.xlu0 %893
      %v897 = vsel %vm669, %v887, 0
      %899 = vmatprep.subr.bf16.mxu0 0
      %900 = vmatpush1.bf16.msra.mxu0 %v888
      %901 = vmatprep.subr.bf16.mxu0 0
      %902 = vmatpush1.bf16.msra.mxu0 %v889
      %903 = vmatprep.subr.bf16.mxu0 0
      %904 = vmatpush1.bf16.msra.mxu0 0
      %905 = vmatprep.subr.bf16.mxu0 0
      %906 = vmatpush1.bf16.msra.mxu0 0
      %907 = vmatprep.subr.bf16.mxu0 0
      %908 = vmatpush1.bf16.msra.mxu0 0
      %909 = vmatprep.subr.bf16.mxu0 0
      %910 = vmatpush1.bf16.msra.mxu0 0
      %911 = vmatprep.subr.bf16.mxu0 0
      %912 = vmatpush1.bf16.msra.mxu0 0
      %913 = vmatprep.subr.bf16.mxu0 0
      %914 = vmatpush1.bf16.msra.mxu0 0
      %915 = vmatprep.subr.bf16.mxu0 0
      %916 = vmatpush1.bf16.msra.mxu0 0
      %917 = vmatprep.subr.bf16.mxu0 0
      %918 = vmatpush1.bf16.msra.mxu0 0
      %919 = vmatprep.subr.bf16.mxu0 0
      %920 = vmatpush1.bf16.msra.mxu0 0
      %921 = vmatprep.subr.bf16.mxu0 0
      %922 = vmatpush1.bf16.msra.mxu0 0
      %923 = vmatprep.subr.bf16.mxu0 0
      %924 = vmatpush1.bf16.msra.mxu0 0
      %925 = vmatprep.subr.bf16.mxu0 0
      %926 = vmatpush1.bf16.msra.mxu0 0
      %927 = vmatprep.subr.bf16.mxu0 0
      %928 = vmatpush1.bf16.msra.mxu0 0
      %929 = vmatprep.subr.bf16.mxu0 0
      %930 = vmatpush1.bf16.msra.mxu0 0
      %931 = vmatprep.mubr.bf16.mxu0 0
      %932 = vmatmul.mubr.bf16.gmra.mrb[0].mxu0 %v897
      %v933 = vpop.f32.mrb[0].mxu0
      %v934 = vadd.f32 %v894, %v933
      %v935 = vpop.f32.mrb[0].mxu0
      %v936 = vpop.f32.mrb[0].mxu0
      %v937 = vpop.f32.mrb[0].mxu0
      %938 = vdwg.mxu0
      %v939 = vpack.c.bf16 %v708, %v708
      %v940 = vpack.c.bf16 %v821, %v821
      %941 = vxpose.xlu0.c.b16.start [1/8] %v939, 128
      %942 = vxpose.xlu0.c.b16.cont [2/8] 0, 128
      %943 = vxpose.xlu0.c.b16.cont [3/8] 0, 128
      %944 = vxpose.xlu0.c.b16.cont [4/8] 0, 128
      %945 = vxpose.xlu0.c.b16.cont [5/8] 0, 128
      %946 = vxpose.xlu0.c.b16.cont [6/8] 0, 128
      %947 = vxpose.xlu0.c.b16.cont [7/8] 0, 128
      %948 = vxpose.xlu0.c.b16.end [8/8] 0, 128
      %v949 = vpop.trf.xlu0
      %v950 = vpop.trf.xlu0
      %v951 = vpop.trf.xlu0
      %v952 = vpop.trf.xlu0
      %v953 = vpop.trf.xlu0
      %v954 = vpop.trf.xlu0
      %v955 = vpop.trf.xlu0
      %v956 = vpop.trf.xlu0
      %vm957 = vcmask 64512
      %v959 = vsel %vm957, %v949, 0
      %v962 = vsel %vm957, %v950, 0
      %v965 = vsel %vm957, %v951, 0
      %v968 = vsel %vm957, %v952, 0
      %vm970 = vcmask 1043456
      %v972 = vsel %vm970, %v940, 0
      %974 = vmatprep.subr.bf16.mxu0 0
      %975 = vmatpush1.bf16.msra.mxu0 %v972
      %976 = vmatprep.subr.bf16.mxu0 0
      %977 = vmatpush1.bf16.msra.mxu0 0
      %978 = vmatprep.subr.bf16.mxu0 0
      %979 = vmatpush1.bf16.msra.mxu0 0
      %980 = vmatprep.subr.bf16.mxu0 0
      %981 = vmatpush1.bf16.msra.mxu0 0
      %982 = vmatprep.subr.bf16.mxu0 0
      %983 = vmatpush1.bf16.msra.mxu0 0
      %984 = vmatprep.subr.bf16.mxu0 0
      %985 = vmatpush1.bf16.msra.mxu0 0
      %986 = vmatprep.subr.bf16.mxu0 0
      %987 = vmatpush1.bf16.msra.mxu0 0
      %988 = vmatprep.subr.bf16.mxu0 0
      %989 = vmatpush1.bf16.msra.mxu0 0
      %990 = vmatprep.subr.bf16.mxu0 0
      %991 = vmatpush1.bf16.msra.mxu0 0
      %992 = vmatprep.subr.bf16.mxu0 0
      %993 = vmatpush1.bf16.msra.mxu0 0
      %994 = vmatprep.subr.bf16.mxu0 0
      %995 = vmatpush1.bf16.msra.mxu0 0
      %996 = vmatprep.subr.bf16.mxu0 0
      %997 = vmatpush1.bf16.msra.mxu0 0
      %998 = vmatprep.subr.bf16.mxu0 0
      %999 = vmatpush1.bf16.msra.mxu0 0
      %1000 = vmatprep.subr.bf16.mxu0 0
      %1001 = vmatpush1.bf16.msra.mxu0 0
      %1002 = vmatprep.subr.bf16.mxu0 0
      %1003 = vmatpush1.bf16.msra.mxu0 0
      %1004 = vmatprep.subr.bf16.mxu0 0
      %1005 = vmatpush1.bf16.msra.mxu0 0
      %1006 = vmatprep.mubr.bf16.mxu0 0
      %1007 = vmatmul.mubr.bf16.gmra.mrb[0].mxu0 %v959
      %v1008 = vpop.f32.mrb[0].mxu0
      %v1009 = vadd.f32 0.0, %v1008
      %v1010 = vpop.f32.mrb[0].mxu0
      %v1011 = vpop.f32.mrb[0].mxu0
      %v1012 = vadd.f32 0.0, %v1011
      %v1013 = vpop.f32.mrb[0].mxu0
      %1014 = vmatprep.mubr.bf16.mxu0 0
      %1015 = vmatmul.mubr.bf16.gmra.mrb[0].mxu0 %v962
      %v1016 = vpop.f32.mrb[0].mxu0
      %v1017 = vadd.f32 0.0, %v1016
      %v1018 = vpop.f32.mrb[0].mxu0
      %v1019 = vpop.f32.mrb[0].mxu0
      %v1020 = vadd.f32 0.0, %v1019
      %v1021 = vpop.f32.mrb[0].mxu0
      %1022 = vmatprep.mubr.bf16.mxu0 0
      %1023 = vmatmul.mubr.bf16.gmra.mrb[0].mxu0 %v965
      %v1024 = vpop.f32.mrb[0].mxu0
      %v1025 = vadd.f32 0.0, %v1024
      %v1026 = vpop.f32.mrb[0].mxu0
      %v1027 = vpop.f32.mrb[0].mxu0
      %v1028 = vadd.f32 0.0, %v1027
      %v1029 = vpop.f32.mrb[0].mxu0
      %1030 = vmatprep.mubr.bf16.mxu0 0
      %1031 = vmatmul.mubr.bf16.gmra.mrb[0].mxu0 %v968
      %v1032 = vpop.f32.mrb[0].mxu0
      %v1033 = vadd.f32 0.0, %v1032
      %v1034 = vpop.f32.mrb[0].mxu0
      %v1035 = vpop.f32.mrb[0].mxu0
      %v1036 = vadd.f32 0.0, %v1035
      %v1037 = vpop.f32.mrb[0].mxu0
      %1038 = vdwg.mxu0
      %vm1039 = vcmask 523264
      %v1040 = vsel %vm1039, %v1009, -inf
      %v1041 = vsel %vm1039, %v1012, -inf
      %v1042 = vsel %vm1039, %v1017, -inf
      %v1043 = vsel %vm1039, %v1020, -inf
      %v1044 = vsel %vm1039, %v1025, -inf
      %v1045 = vmax.f32 %v1040, %v1044
      %v1046 = vsel %vm1039, %v1028, -inf
      %v1047 = vmax.f32 %v1041, %v1046
      %v1048 = vsel %vm1039, %v1033, -inf
      %v1049 = vmax.f32 %v1042, %v1048
      %v1050 = vsel %vm1039, %v1036, -inf
      %v1051 = vmax.f32 %v1043, %v1050
      %v1052 = vmax.f32 %v1045, %v1047
      %v1053 = vmax.f32 %v1049, %v1051
      %v1054 = vmax.f32 %v1052, %v1053
      %v1055 = vrot.slane %v1054, 4
      %v1056 = vmax.f32 %v1054, %v1055
      %v1057 = vrot.slane %v1056, 2
      %v1058 = vmax.f32 %v1056, %v1057
      %v1059 = vrot.slane %v1058, 1
      %v1060 = vmax.f32 %v1058, %v1059
      %v1061 = vsub.f32 %v1009, %v1060
      %v1062 = vsub.f32 %v1012, %v1060
      %v1063 = vsub.f32 %v1017, %v1060
      %v1064 = vsub.f32 %v1020, %v1060
      %v1065 = vsub.f32 %v1025, %v1060
      %v1066 = vsub.f32 %v1028, %v1060
      %v1067 = vsub.f32 %v1033, %v1060
      %v1068 = vsub.f32 %v1036, %v1060
      %v1069 = vmul.f32 %v1061, 1.442695
      %v1070 = vpow.pop %v1069
      %v1071 = vmul.f32 %v1062, 1.442695
      %v1072 = vpow.pop %v1071
      %v1073 = vmul.f32 %v1063, 1.442695
      %v1074 = vpow.pop %v1073
      %v1075 = vmul.f32 %v1064, 1.442695
      %v1076 = vpow.pop %v1075
      %v1077 = vmul.f32 %v1065, 1.442695
      %v1078 = vpow.pop %v1077
      %v1079 = vmul.f32 %v1066, 1.442695
      %v1080 = vpow.pop %v1079
      %v1081 = vmul.f32 %v1067, 1.442695
      %v1082 = vpow.pop %v1081
      %v1083 = vmul.f32 %v1068, 1.442695
      %v1084 = vpow.pop %v1083
      %v1085 = vsel %vm1039, %v1070, 0.0
      %v1086 = vsel %vm1039, %v1072, 0.0
      %v1087 = vadd.f32 %v1085, %v1086
      %v1088 = vsel %vm1039, %v1074, 0.0
      %v1089 = vadd.f32 %v1087, %v1088
      %v1090 = vsel %vm1039, %v1076, 0.0
      %v1091 = vadd.f32 %v1089, %v1090
      %v1092 = vsel %vm1039, %v1078, 0.0
      %v1093 = vadd.f32 %v1091, %v1092
      %v1094 = vsel %vm1039, %v1080, 0.0
      %v1095 = vadd.f32 %v1093, %v1094
      %v1096 = vsel %vm1039, %v1082, 0.0
      %v1097 = vadd.f32 %v1095, %v1096
      %v1098 = vsel %vm1039, %v1084, 0.0
      %v1099 = vadd.f32 %v1097, %v1098
      %v1100 = vrot.slane %v1099, 4
      %v1101 = vadd.f32 %v1099, %v1100
      %v1102 = vrot.slane %v1101, 2
      %v1103 = vadd.f32 %v1101, %v1102
      %v1104 = vrot.slane %v1103, 1
      %v1105 = vadd.f32 %v1103, %v1104
      %v1106 = vrcp.pop %v1105
      %v1107 = vmul.f32 %v1070, %v1106
      %v1108 = vmul.f32 %v1072, %v1106
      %v1109 = vmul.f32 %v1074, %v1106
      %v1110 = vmul.f32 %v1076, %v1106
      %v1111 = vmul.f32 %v1078, %v1106
      %v1112 = vmul.f32 %v1080, %v1106
      %v1113 = vmul.f32 %v1082, %v1106
      %v1114 = vmul.f32 %v1084, %v1106
      %v1116 = vsel %vm1039, %v934, 0
      %1118 = vmatprep.subr.mxu0 0.0
      %1119 = vmatpush1.msra.mxu0 %v1107
      %1120 = vmatprep.subr.mxu0 0.0
      %1121 = vmatpush1.msra.mxu0 %v1108
      %1122 = vmatprep.subr.mxu0 0.0
      %1123 = vmatpush1.msra.mxu0 %v1109
      %1124 = vmatprep.subr.mxu0 0.0
      %1125 = vmatpush1.msra.mxu0 %v1110
      %1126 = vmatprep.subr.mxu0 0.0
      %1127 = vmatpush1.msra.mxu0 %v1111
      %1128 = vmatprep.subr.mxu0 0.0
      %1129 = vmatpush1.msra.mxu0 %v1112
      %1130 = vmatprep.subr.mxu0 0.0
      %1131 = vmatpush1.msra.mxu0 %v1113
      %1132 = vmatprep.subr.mxu0 0.0
      %1133 = vmatpush1.msra.mxu0 %v1114
      %1134 = vmatprep.subr.mxu0 0.0
      %1135 = vmatpush1.msra.mxu0 0.0
      %1136 = vmatprep.subr.mxu0 0.0
      %1137 = vmatpush1.msra.mxu0 0.0
      %1138 = vmatprep.subr.mxu0 0.0
      %1139 = vmatpush1.msra.mxu0 0.0
      %1140 = vmatprep.subr.mxu0 0.0
      %1141 = vmatpush1.msra.mxu0 0.0
      %1142 = vmatprep.subr.mxu0 0.0
      %1143 = vmatpush1.msra.mxu0 0.0
      %1144 = vmatprep.subr.mxu0 0.0
      %1145 = vmatpush1.msra.mxu0 0.0
      %1146 = vmatprep.subr.mxu0 0.0
      %1147 = vmatpush1.msra.mxu0 0.0
      %1148 = vmatprep.subr.mxu0 0.0
      %1149 = vmatpush1.msra.mxu0 0.0
      %1150 = vmatprep.subr.mxu0 0.0
      %1151 = vmatpush1.msra.mxu0 0.0
      %1152 = vmatprep.subr.mxu0 0.0
      %1153 = vmatpush1.msra.mxu0 0.0
      %1154 = vmatprep.subr.mxu0 0.0
      %1155 = vmatpush1.msra.mxu0 0.0
      %1156 = vmatprep.subr.mxu0 0.0
      %1157 = vmatpush1.msra.mxu0 0.0
      %1158 = vmatprep.subr.mxu0 0.0
      %1159 = vmatpush1.msra.mxu0 0.0
      %1160 = vmatprep.subr.mxu0 0.0
      %1161 = vmatpush1.msra.mxu0 0.0
      %1162 = vmatprep.subr.mxu0 0.0
      %1163 = vmatpush1.msra.mxu0 0.0
      %1164 = vmatprep.subr.mxu0 0.0
      %1165 = vmatpush1.msra.mxu0 0.0
      %1166 = vmatprep.subr.mxu0 0.0
      %1167 = vmatpush1.msra.mxu0 0.0
      %1168 = vmatprep.subr.mxu0 0.0
      %1169 = vmatpush1.msra.mxu0 0.0
      %1170 = vmatprep.subr.mxu0 0.0
      %1171 = vmatpush1.msra.mxu0 0.0
      %1172 = vmatprep.subr.mxu0 0.0
      %1173 = vmatpush1.msra.mxu0 0.0
      %1174 = vmatprep.subr.mxu0 0.0
      %1175 = vmatpush1.msra.mxu0 0.0
      %1176 = vmatprep.subr.mxu0 0.0
      %1177 = vmatpush1.msra.mxu0 0.0
      %1178 = vmatprep.subr.mxu0 0.0
      %1179 = vmatpush1.msra.mxu0 0.0
      %1180 = vmatprep.subr.mxu0 0.0
      %1181 = vmatpush1.msra.mxu0 0.0
      %1182 = vmatprep.mubr.f32.mxu0 0.0
      %1183 = vmatmul.mubr.f32.gmra.mrb[0].mxu0 %v1116
      %v1184 = vpop.f32.mrb[0].mxu0
      %v1185 = vadd.f32 0.0, %v1184
      %v1186 = vpop.f32.mrb[0].mxu0
      %1187 = vdwg.mxu0
      %v1188 = vld [vmem:[%s10] sm:$0xff]
      %v1189 = vld [vmem:[%s10 + $0x8] sm:$0xff]
      %v1190 = vld [vmem:[%s10 + $0x10] sm:$0xff]
      %v1191 = vld [vmem:[%s10 + $0x18] sm:$0xff]
      %v1192 = vld [vmem:[%s11] sm:$0xff]
      %v1193 = vld [vmem:[%s11 + $0x8] sm:$0xff]
      %v1194 = vld [vmem:[%s11 + $0x10] sm:$0xff]
      %v1195 = vld [vmem:[%s11 + $0x18] sm:$0xff]
      %1197 = vset.pattern.permute.xlu0 0
      %1198 = vperm.xlu0 %1197, %v1192
      %v1199 = vpop.permute.xlu0 %1198
      %1202 = vset.pattern.permute.xlu0 0
      %1203 = vperm.xlu0 %1202, %v1193
      %v1204 = vpop.permute.xlu0 %1203
      %1207 = vset.pattern.permute.xlu0 0
      %1208 = vperm.xlu0 %1207, %v1194
      %v1209 = vpop.permute.xlu0 %1208
      %1212 = vset.pattern.permute.xlu0 0
      %1213 = vperm.xlu0 %1212, %v1195
      %v1214 = vpop.permute.xlu0 %1213
      %v1217 = vsel %vm957, %v1188, 0
      %v1220 = vsel %vm957, %v1189, 0
      %v1223 = vsel %vm957, %v1190, 0
      %v1226 = vsel %vm957, %v1191, 0
      %1228 = vmatprep.subr.mxu0 0.0
      %1229 = vmatpush1.msra.mxu0 %v1185
      %1230 = vmatprep.subr.mxu0 0.0
      %1231 = vmatpush1.msra.mxu0 0.0
      %1232 = vmatprep.subr.mxu0 0.0
      %1233 = vmatpush1.msra.mxu0 0.0
      %1234 = vmatprep.subr.mxu0 0.0
      %1235 = vmatpush1.msra.mxu0 0.0
      %1236 = vmatprep.subr.mxu0 0.0
      %1237 = vmatpush1.msra.mxu0 0.0
      %1238 = vmatprep.subr.mxu0 0.0
      %1239 = vmatpush1.msra.mxu0 0.0
      %1240 = vmatprep.subr.mxu0 0.0
      %1241 = vmatpush1.msra.mxu0 0.0
      %1242 = vmatprep.subr.mxu0 0.0
      %1243 = vmatpush1.msra.mxu0 0.0
      %1244 = vmatprep.subr.mxu0 0.0
      %1245 = vmatpush1.msra.mxu0 0.0
      %1246 = vmatprep.subr.mxu0 0.0
      %1247 = vmatpush1.msra.mxu0 0.0
      %1248 = vmatprep.subr.mxu0 0.0
      %1249 = vmatpush1.msra.mxu0 0.0
      %1250 = vmatprep.subr.mxu0 0.0
      %1251 = vmatpush1.msra.mxu0 0.0
      %1252 = vmatprep.subr.mxu0 0.0
      %1253 = vmatpush1.msra.mxu0 0.0
      %1254 = vmatprep.subr.mxu0 0.0
      %1255 = vmatpush1.msra.mxu0 0.0
      %1256 = vmatprep.subr.mxu0 0.0
      %1257 = vmatpush1.msra.mxu0 0.0
      %1258 = vmatprep.subr.mxu0 0.0
      %1259 = vmatpush1.msra.mxu0 0.0
      %1260 = vmatprep.subr.mxu0 0.0
      %1261 = vmatpush1.msra.mxu0 0.0
      %1262 = vmatprep.subr.mxu0 0.0
      %1263 = vmatpush1.msra.mxu0 0.0
      %1264 = vmatprep.subr.mxu0 0.0
      %1265 = vmatpush1.msra.mxu0 0.0
      %1266 = vmatprep.subr.mxu0 0.0
      %1267 = vmatpush1.msra.mxu0 0.0
      %1268 = vmatprep.subr.mxu0 0.0
      %1269 = vmatpush1.msra.mxu0 0.0
      %1270 = vmatprep.subr.mxu0 0.0
      %1271 = vmatpush1.msra.mxu0 0.0
      %1272 = vmatprep.subr.mxu0 0.0
      %1273 = vmatpush1.msra.mxu0 0.0
      %1274 = vmatprep.subr.mxu0 0.0
      %1275 = vmatpush1.msra.mxu0 0.0
      %1276 = vmatprep.subr.mxu0 0.0
      %1277 = vmatpush1.msra.mxu0 0.0
      %1278 = vmatprep.subr.mxu0 0.0
      %1279 = vmatpush1.msra.mxu0 0.0
      %1280 = vmatprep.subr.mxu0 0.0
      %1281 = vmatpush1.msra.mxu0 0.0
      %1282 = vmatprep.subr.mxu0 0.0
      %1283 = vmatpush1.msra.mxu0 0.0
      %1284 = vmatprep.subr.mxu0 0.0
      %1285 = vmatpush1.msra.mxu0 0.0
      %1286 = vmatprep.subr.mxu0 0.0
      %1287 = vmatpush1.msra.mxu0 0.0
      %1288 = vmatprep.subr.mxu0 0.0
      %1289 = vmatpush1.msra.mxu0 0.0
      %1290 = vmatprep.subr.mxu0 0.0
      %1291 = vmatpush1.msra.mxu0 0.0
      %1292 = vmatprep.mubr.f32.mxu0 0.0
      %1293 = vmatmul.mubr.f32.gmra.mrb[0].mxu0 %v1217
      %v1294 = vpop.f32.mrb[0].mxu0
      %v1295 = vadd.f32 %v1199, %v1294
      %v1296 = vpop.f32.mrb[0].mxu0
      %1297 = vmatprep.mubr.f32.mxu0 0.0
      %1298 = vmatmul.mubr.f32.gmra.mrb[0].mxu0 %v1220
      %v1299 = vpop.f32.mrb[0].mxu0
      %v1300 = vadd.f32 %v1204, %v1299
      %v1301 = vpop.f32.mrb[0].mxu0
      %1302 = vmatprep.mubr.f32.mxu0 0.0
      %1303 = vmatmul.mubr.f32.gmra.mrb[0].mxu0 %v1223
      %v1304 = vpop.f32.mrb[0].mxu0
      %v1305 = vadd.f32 %v1209, %v1304
      %v1306 = vpop.f32.mrb[0].mxu0
      %1307 = vmatprep.mubr.f32.mxu0 0.0
      %1308 = vmatmul.mubr.f32.gmra.mrb[0].mxu0 %v1226
      %v1309 = vpop.f32.mrb[0].mxu0
      %v1310 = vadd.f32 %v1214, %v1309
      %v1311 = vpop.f32.mrb[0].mxu0
      %1312 = vdwg.mxu0
      %1313 = vst.msk [vmem:[%s468] sm:$0xff] %vm1039, %v1295
      %1314 = vst.msk [vmem:[%s468 + $0x8] sm:$0xff] %vm1039, %v1300
      %1315 = vst.msk [vmem:[%s468 + $0x10] sm:$0xff] %vm1039, %v1305
      %1316 = vst.msk [vmem:[%s468 + $0x18] sm:$0xff] %vm1039, %v1310
      %s1317 = smul.u32 4, %s23
      %p1318 = scmp.lt.s32.totalorder %s1317, 7
      %s1319 = scalar_select %p1318, %s1317, 7
      %s1320 = smul.addr %s1319, 8
      %s1321 = scalar_lea.vmem %s12, %s1320
      // Predicated region
      $region69: #{self_attention_forward.1} parent=67 // pred_check
        %p1322 = pneg %p308
      $region70: #{self_attention_forward.1} parent=67 // pred_check_branch
        %1324 = sbr.rel (%p1322) target = $region72
      $region71: #{self_attention_forward.1} parent=67 // pred_region
        %s1325 = smul.u32 4, %s23
      $region72: #{self_attention_forward.1} parent=67 // pred_fallthru
        _
    $region68: #{self_attention_forward.1} parent=5 // pred_fallthru
      _
    %p1326 = scmp.le.s32.totalorder 2, %s18
    // Predicated region
    $region73: #{self_attention_forward.1} parent=5 // pred_check
      %p1327 = pneg %p1326
    $region74: #{self_attention_forward.1} parent=5 // pred_check_branch
      %1329 = sbr.rel (%p1327) target = $region76
    $region75: #{self_attention_forward.1} parent=5 // pred_region
      %s1330 = ssub.s32 %s18, 2
      // Predicated region
      $region77: #{self_attention_forward.1} parent=75 // pred_check
        %p1331 = pneg %p314
      $region78: #{self_attention_forward.1} parent=75 // pred_check_branch
        %1333 = sbr.rel (%p1331) target = $region80
      $region79: #{self_attention_forward.1} parent=75 // pred_region
        %s1334 = smul.u32 4, %s24
        %p1335 = scmp.lt.s32.totalorder %s1334, 7
        %s1336 = scalar_select %p1335, %s1334, 7
        %s1337 = smul.addr %s1336, 8
        %s1338 = scalar_lea.vmem %s12, %s1337
      $region80: #{self_attention_forward.1} parent=75 // pred_fallthru
        _
    $region76: #{self_attention_forward.1} parent=5 // pred_fallthru
      _
  $region6: #{self_attention_forward.1} parent=0 // loop_footer
    %s22 = sadd.s32 1, %s18
  $region7: #{self_attention_forward.1} parent=0 // loop_footer_branch
    %17 = sbr.rel target = $region3
  $region8: #{self_attention_forward.1} parent=0 // loop_exit
    _

</llo_original>
